<compile_context>
chip_gen: v6e
topology: v6e:2x2x1
jax: 0.10.0
libtpu: 0.0.40
codegen_flags: <defaults>
</compile_context>

<pallas_src>
import jax
import jax.numpy as jnp
from jax.experimental import pallas as pl
from jax.experimental.pallas import tpu as pltpu


# -----------------------------------------------------------------------------
# In-kernel helpers
# -----------------------------------------------------------------------------
_INV_SQRT2 = 0.7071067811865476


def _erf_f32(x):
    # Abramowitz & Stegun 7.1.26 (|err| < 1.5e-7). Built only from ops with
    # guaranteed Mosaic lowerings; the reciprocal is the EUP approx variant so
    # the divide does not occupy the VALU over the (rows, H) region.
    p = 0.3275911
    a1, a2, a3, a4, a5 = (0.254829592, -0.284496736, 1.421413741,
                          -1.453152027, 1.061405429)
    ax = jnp.abs(x)
    t = pl.reciprocal(1.0 + p * ax, approx=True)
    poly = ((((a5 * t + a4) * t + a3) * t + a2) * t + a1) * t
    y = 1.0 - poly * jnp.exp(-ax * ax)
    return jnp.where(x >= 0.0, y, -y)


def _gelu_exact(x):
    return 0.5 * x * (1.0 + _erf_f32(x * _INV_SQRT2))


# -----------------------------------------------------------------------------
# Fused Pallas kernel: all decoder layers + skip gating + final concat
# -----------------------------------------------------------------------------
def _fused_decoder_kernel(gate_ref, sidx_ref,                      # scalar prefetch (SMEM)
                          x_ref, skip_ref, shift_ref, scale_ref,   # inputs (VMEM)
                          w1_ref, b1_ref, w2_ref, b2_ref,
                          out_ref,                                 # output (VMEM)
                          acc_ref):                                # scratch (VMEM f32)
    del sidx_ref  # consumed by the skip BlockSpec index_map only
    layer = pl.program_id(1)
    num_layers = pl.num_programs(1)

    # First layer of this row tile: load the residual stream into the f32 VMEM
    # accumulator; it stays resident there for all remaining layers.
    @pl.when(layer == 0)
    def _():
        acc_ref[...] = x_ref[...].astype(jnp.float32)

    x = acc_ref[...]                                   # (TB, L, D), f32
    tb, ltok, d = x.shape

    # LayerNorm over the feature (lane) axis, no learnable affine.
    mu = jnp.mean(x, axis=-1, keepdims=True)
    var = jnp.mean(jnp.square(x - mu), axis=-1, keepdims=True)
    xn = (x - mu) * jax.lax.rsqrt(var + 1e-5)

    # AdaLN modulation. shift/scale for ALL layers were DMA'd once per row
    # tile; a dynamic first-axis index picks this layer's (TB, 1, D) pair.
    h = xn * (1.0 + scale_ref[layer]) + shift_ref[layer]      # (TB, L, D)

    # MLP on the MXU: fold batch into rows; weights already bf16, f32 accum.
    h2 = h.reshape(tb * ltok, d).astype(jnp.bfloat16)
    h2 = jnp.dot(h2, w1_ref[0], preferred_element_type=jnp.float32) + b1_ref[layer]
    h2 = _gelu_exact(h2)                               # exact GELU (PyTorch default)
    h2 = jnp.dot(h2.astype(jnp.bfloat16), w2_ref[0],
                 preferred_element_type=jnp.float32) + b2_ref[layer]

    x_new = x + h2.reshape(tb, ltok, d)

    # Residual + predicated encoder-skip add: gate==0 layers (first & last) do
    # no skip load / mul / add at all; gate==1 layers add the resident block.
    gate_on = gate_ref[layer] != 0

    @pl.when(gate_on)
    def _():
        acc_ref[...] = x_new + skip_ref[0].astype(jnp.float32)

    @pl.when(jnp.logical_not(gate_on))
    def _():
        acc_ref[...] = x_new

    # Last layer: fused `torch.cat([x, skips[0]], dim=-1)` epilogue; this is
    # the only HBM write of the residual stream. (The output block is written
    # ONLY here -> layer axis must remain the last, "arbitrary" grid axis.)
    @pl.when(layer == num_layers - 1)
    def _():
        out_ref[:, :, :d] = acc_ref[...].astype(out_ref.dtype)
        out_ref[:, :, d:] = skip_ref[0].astype(out_ref.dtype)


# -----------------------------------------------------------------------------
# Wrapper: exact BackboneDecoderLayers forward semantics
# -----------------------------------------------------------------------------
def _pick_batch_tile(batch, tokens, target_rows=256, min_row_tiles=2):
    """Batch tile: feed ~target_rows MXU rows per grid step (v6e/v7x 256-wide
    MXUs) while keeping >= min_row_tiles blocks on the 'parallel' grid axis so
    both v7x TensorCores get work.  v5e's 128-wide MXU is saturated either way.
    """
    divisors = [d for d in range(1, batch + 1) if batch % d == 0]
    best = 1
    for d in divisors:
        if batch >= min_row_tiles and batch // d < min_row_tiles:
            continue                      # keep a >=2-wide parallel axis
        if d * tokens <= max(target_rows, tokens):
            best = max(best, d)
    return best


def backbone_decoder_layers_forward(layer_params, x, skips, c,
                                    all_enc_res, padded_outs, rollout_step,
                                    *, batch_tile=None):
    """Fused BackboneDecoderLayers forward. x: (B, L, D) -> (B, L, 2D)."""
    num_layers = len(layer_params)
    assert num_layers >= 2, "fused kernel assumes >= 2 decoder layers"
    assert len(skips) >= 1
    B, L, D = x.shape
    H = layer_params[0]["w1"].shape[-1]

    # TODO(synk): metadata only (incl. the original padded_outs[index-1] wrap at
    # index == 0, mirroring PyTorch's negative indexing); the real Aurora layer
    # consumes these for window/crop logic.
    for i in range(num_layers):
        index = num_layers - i - 1
        _ = all_enc_res[index]
        _ = padded_outs[index - 1]
    del rollout_step

    # Stack per-layer parameters (a real model would store them stacked).
    # Matmul weights pre-cast to bf16 in HBM: halves the per-layer weight
    # stream and removes the per-step in-kernel cast. Biases / acc stay f32.
    w_mod = jnp.stack([p["w_mod"] for p in layer_params])                   # (NL, D, 2D)
    b_mod = jnp.stack([p["b_mod"] for p in layer_params])                   # (NL, 2D)
    w1 = jnp.stack([p["w1"] for p in layer_params]).astype(jnp.bfloat16)    # (NL, D, H)
    b1 = jnp.stack([p["b1"] for p in layer_params])                         # (NL, 1, H)
    w2 = jnp.stack([p["w2"] for p in layer_params]).astype(jnp.bfloat16)    # (NL, H, D)
    b2 = jnp.stack([p["b2"] for p in layer_params])                         # (NL, 1, D)

    # All per-layer AdaLN (shift, scale) in ONE einsum, hoisted out of the loop.
    mods = jnp.einsum("bd,lde->lbe", c, w_mod) + b_mod[:, None, :]          # (NL, B, 2D)
    shift = mods[..., :D].reshape(num_layers, B, 1, D)
    scale = mods[..., D:].reshape(num_layers, B, 1, D)

    skips_arr = jnp.stack(skips)                                            # (NS, B, L, D)

    # Per-layer skip selection / gating (mirrors the PyTorch loop):
    #   i == 0        : no skip add  (index_map points at the next layer's block)
    #   0 < i < NL-1  : add skips[NL-2-i]
    #   i == NL-1     : no add, but skips[0] feeds the fused final concat.
    skip_idx, skip_gate = [], []
    for i in range(num_layers):
        if 0 < i < num_layers - 1:
            skip_idx.append(num_layers - 2 - i)
            skip_gate.append(1)
        elif i == num_layers - 1:
            skip_idx.append(0)
            skip_gate.append(0)
        else:  # i == 0 (and num_layers > 1)
            skip_idx.append(max(num_layers - 3, 0))
            skip_gate.append(0)
    skip_idx = jnp.asarray(skip_idx, jnp.int32)
    skip_gate = jnp.asarray(skip_gate, jnp.int32)

    tb = batch_tile if batch_tile is not None else _pick_batch_tile(B, L)
    assert B % tb == 0
    row_tiles = B // tb

    grid_spec = pltpu.PrefetchScalarGridSpec(
        num_scalar_prefetch=2,                    # skip_gate, skip_idx -> SMEM
        grid=(row_tiles, num_layers),
        in_specs=[
            # x: read only at layer==0, same block across the layer loop.
            pl.BlockSpec((tb, L, D), lambda r, l, g, s: (r, 0, 0)),
            # skips: data-dependent layer index; gate==0 layers alias a
            # neighboring layer's block so no extra DMA is issued.
            pl.BlockSpec((1, tb, L, D), lambda r, l, g, s: (s[l], r, 0, 0)),
            # shift/scale/b1/b2: ALL layers in one block per row tile (one DMA
            # instead of NL tiny ones); kernel indexes [layer] dynamically.
            pl.BlockSpec((num_layers, tb, 1, D), lambda r, l, g, s: (0, r, 0, 0)),
            pl.BlockSpec((num_layers, tb, 1, D), lambda r, l, g, s: (0, r, 0, 0)),
            # Per-layer bf16 weights, streamed along the layer axis.
            pl.BlockSpec((1, D, H), lambda r, l, g, s: (l, 0, 0)),
            pl.BlockSpec((num_layers, 1, H), lambda r, l, g, s: (0, 0, 0)),
            pl.BlockSpec((1, H, D), lambda r, l, g, s: (l, 0, 0)),
            pl.BlockSpec((num_layers, 1, D), lambda r, l, g, s: (0, 0, 0)),
        ],
        out_specs=pl.BlockSpec((tb, L, 2 * D), lambda r, l, g, s: (r, 0, 0)),
        scratch_shapes=[pltpu.VMEM((tb, L, D), jnp.float32)],
    )

    flops = 4 * num_layers * B * L * D * H
    bytes_accessed = (4 * B * L * D                                  # x (read once)
                      + 4 * 2 * B * L * D                            # ~2 distinct skip blocks
                      + 4 * 2 * num_layers * B * D                   # shift / scale
                      + 2 * row_tiles * num_layers * (D * H + H * D) # bf16 weights
                      + 4 * num_layers * (H + D)                     # biases (once)
                      + 4 * B * L * 2 * D)                           # output
    cost = pl.CostEstimate(flops=flops,
                           transcendentals=2 * num_layers * B * L * H,  # exp + rcp
                           bytes_accessed=bytes_accessed)

    return pl.pallas_call(
        _fused_decoder_kernel,
        out_shape=jax.ShapeDtypeStruct((B, L, 2 * D), x.dtype),
        grid_spec=grid_spec,
        compiler_params=pltpu.CompilerParams(
            dimension_semantics=("parallel", "arbitrary")),
        cost_estimate=cost,
    )(skip_gate, skip_idx, x, skips_arr, shift, scale, w1, b1, w2, b2)


# -----------------------------------------------------------------------------
# Pure-JAX references — direct transcription of the PyTorch loop.
# emulate_bf16=True mirrors the kernel's bf16-operand / f32-accumulate matmuls
# so the correctness check is tight (not masked by bf16 quantization).
# -----------------------------------------------------------------------------
def _reference_forward(layer_params, x, skips, c,
                       all_enc_res, padded_outs, rollout_step,
                       *, emulate_bf16=False):
    num_layers = len(layer_params)
    D = x.shape[-1]
    for i, p in enumerate(layer_params):
        index = num_layers - i - 1
        _ = all_enc_res[index]
        _ = padded_outs[index - 1]
        mods = c @ p["w_mod"] + p["b_mod"]
        shift = mods[:, :D][:, None, :]
        scale = mods[:, D:][:, None, :]
        mu = jnp.mean(x, axis=-1, keepdims=True)
        var = jnp.mean(jnp.square(x - mu), axis=-1, keepdims=True)
        xn = (x - mu) * jax.lax.rsqrt(var + 1e-5)
        h = xn * (1.0 + scale) + shift
        if emulate_bf16:
            h1 = jnp.dot(h.astype(jnp.bfloat16), p["w1"].astype(jnp.bfloat16),
                         preferred_element_type=jnp.float32) + p["b1"]
            h1 = jax.nn.gelu(h1, approximate=False)
            h = jnp.dot(h1.astype(jnp.bfloat16), p["w2"].astype(jnp.bfloat16),
                        preferred_element_type=jnp.float32) + p["b2"]
        else:
            h = jax.nn.gelu(h @ p["w1"] + p["b1"], approximate=False) @ p["w2"] + p["b2"]
        x = x + h
        if 0 < i < num_layers - 1:
            x = x + skips[index - 1]
        elif i == num_layers - 1:
            x = jnp.concatenate([x, skips[0]], axis=-1)
    return x


# -----------------------------------------------------------------------------
# Deterministic parameter construction
# -----------------------------------------------------------------------------
def make_layer_params(key, num_layers, d, hidden):
    params = []
    for li in range(num_layers):
        k = jax.random.fold_in(key, li)
        k0, k1, k2 = jax.random.split(k, 3)
        params.append({
            "w_mod": jax.random.normal(k0, (d, 2 * d), jnp.float32) * 0.02,
            "b_mod": jnp.zeros((2 * d,), jnp.float32),
            "w1": jax.random.normal(k1, (d, hidden), jnp.float32) * 0.02,
            "b1": jnp.zeros((1, hidden), jnp.float32),
            "w2": jax.random.normal(k2, (hidden, d), jnp.float32) * 0.02,
            "b2": jnp.zeros((1, d), jnp.float32),
        })
    return params


if __name__ == "__main__":
    # Lane-dense small shapes: D / 2D / H are multiples of 128 so every vreg,
    # MXU push and store is dense. The tile picker keeps 2 row tiles (both v7x
    # TensorCores busy) with tb*L = 128 MXU rows each; with a larger batch it
    # would grow tiles toward 256 rows for the 256-wide v6e/v7x MXUs.
    B, L, D, H = 4, 64, 128, 256
    NUM_DECODER_LAYERS = 4

    key = jax.random.PRNGKey(0)
    kx, kc, kp, ks = jax.random.split(key, 4)

    x = jax.random.normal(kx, (B, L, D), jnp.float32)
    c = jax.random.normal(kc, (B, D), jnp.float32)
    skips = [jax.random.normal(jax.random.fold_in(ks, j), (B, L, D), jnp.float32)
             for j in range(NUM_DECODER_LAYERS - 1)]

    # Resolution / padding metadata analogous to Aurora's encoder bookkeeping.
    all_enc_res = [(8, 8, 2)] * NUM_DECODER_LAYERS
    padded_outs = [(0, 0, 0)] * NUM_DECODER_LAYERS
    rollout_step = 0

    layer_params = make_layer_params(kp, NUM_DECODER_LAYERS, D, H)

    out = backbone_decoder_layers_forward(
        layer_params, x, skips, c, all_enc_res, padded_outs, rollout_step)
    out = jax.block_until_ready(out)

    assert out.shape == (B, L, 2 * D), out.shape
    assert bool(jnp.all(jnp.isfinite(out)))

    # Tight check against a bf16-matmul-emulating reference (isolates kernel
    # bugs from expected bf16 quantization) plus a loose f32 sanity check.
    ref_bf16 = _reference_forward(layer_params, x, skips, c, all_enc_res,
                                  padded_outs, rollout_step, emulate_bf16=True)
    ref_f32 = _reference_forward(layer_params, x, skips, c, all_enc_res,
                                 padded_outs, rollout_step, emulate_bf16=False)
    err_bf16 = float(jnp.max(jnp.abs(out - ref_bf16)))
    err_f32 = float(jnp.max(jnp.abs(out - ref_f32)))
    assert err_bf16 < 2.5e-2, err_bf16
    assert err_f32 < 1e-1, err_f32

    print("KERNEL_OK")
</pallas_src>

<mosaic_0001>
module attributes {stable_mosaic.version = 11 : i64} {
  func.func @_fused_decoder_kernel(%arg0: i32, %arg1: i32, %arg2: memref<4xi32, #tpu.memory_space<smem>>, %arg3: memref<4xi32, #tpu.memory_space<smem>>, %arg4: memref<2x64x128xf32, #tpu.memory_space<vmem>>, %arg5: memref<1x2x64x128xf32, #tpu.memory_space<vmem>>, %arg6: memref<4x2x1x128xf32, #tpu.memory_space<vmem>>, %arg7: memref<4x2x1x128xf32, #tpu.memory_space<vmem>>, %arg8: memref<1x128x256xbf16, #tpu.memory_space<vmem>>, %arg9: memref<4x1x256xf32, #tpu.memory_space<vmem>>, %arg10: memref<1x256x128xbf16, #tpu.memory_space<vmem>>, %arg11: memref<4x1x128xf32, #tpu.memory_space<vmem>>, %arg12: memref<2x64x256xf32, #tpu.memory_space<vmem>>, %arg13: memref<2x64x128xf32, #tpu.memory_space<vmem>>) attributes {dimension_semantics = [#tpu.dimension_semantics<parallel>, #tpu.dimension_semantics<arbitrary>], iteration_bounds = array<i64: 2, 4>, scalar_prefetch = 2 : i64, scratch_operands = 1 : i64, tpu.core_type = #tpu.core_type<tc>, window_params = [{transform_indices = @transform_0, window_bounds = array<i64: 2, 64, 128>}, {transform_indices = @transform_1, window_bounds = array<i64: 1, 2, 64, 128>}, {transform_indices = @transform_2, window_bounds = array<i64: 4, 2, 1, 128>}, {transform_indices = @transform_3, window_bounds = array<i64: 4, 2, 1, 128>}, {transform_indices = @transform_4, window_bounds = array<i64: 1, 128, 256>}, {pipeline_mode = #tpu.pipeline_mode<synchronous>, transform_indices = @transform_5, window_bounds = array<i64: 4, 1, 256>}, {transform_indices = @transform_6, window_bounds = array<i64: 1, 256, 128>}, {pipeline_mode = #tpu.pipeline_mode<synchronous>, transform_indices = @transform_7, window_bounds = array<i64: 4, 1, 128>}, {transform_indices = @transform_8, window_bounds = array<i64: 2, 64, 256>}]} {
    %c0_i32 = arith.constant 0 : i32
    %0 = arith.cmpi eq, %arg1, %c0_i32 : i32
    %1 = arith.extui %0 : i1 to i32
    %c0_i32_0 = arith.constant 0 : i32
    %2 = arith.cmpi ne, %1, %c0_i32_0 : i32
    scf.if %2 {
      %c0_44 = arith.constant 0 : index
      %c0_45 = arith.constant 0 : index
      %c0_46 = arith.constant 0 : index
      %105 = vector.load %arg4[%c0_44, %c0_45, %c0_46] : memref<2x64x128xf32, #tpu.memory_space<vmem>>, vector<2x64x128xf32>
      %c0_47 = arith.constant 0 : index
      %c0_48 = arith.constant 0 : index
      %c0_49 = arith.constant 0 : index
      %106 = vector.load %arg13[%c0_47, %c0_48, %c0_49] : memref<2x64x128xf32, #tpu.memory_space<vmem>>, vector<2x64x128xf32>
      tpu.vector_store %arg13[%c0_47, %c0_48, %c0_49], %105 {strides = array<i32>} : memref<2x64x128xf32, #tpu.memory_space<vmem>>, vector<2x64x128xf32>,
    } else {
    }
    %c0 = arith.constant 0 : index
    %c0_1 = arith.constant 0 : index
    %c0_2 = arith.constant 0 : index
    %3 = vector.load %arg13[%c0, %c0_1, %c0_2] : memref<2x64x128xf32, #tpu.memory_space<vmem>>, vector<2x64x128xf32>
    %cst = arith.constant dense<0.000000e+00> : vector<2x64xf32>
    %4 = vector.multi_reduction <add>, %3, %cst [2] : vector<2x64x128xf32> to vector<2x64xf32>
    %5 = vector.shape_cast %4 : vector<2x64xf32> to vector<2x64x1xf32>
    %cst_3 = arith.constant 1.280000e+02 : f32
    %6 = vector.broadcast %cst_3 : f32 to vector<2x64x1xf32>
    %7 = arith.divf %5, %6 : vector<2x64x1xf32>
    %8 = vector.broadcast %7 : vector<2x64x1xf32> to vector<2x64x128xf32>
    %9 = arith.subf %3, %8 : vector<2x64x128xf32>
    %10 = arith.mulf %9, %9 : vector<2x64x128xf32>
    %cst_4 = arith.constant dense<0.000000e+00> : vector<2x64xf32>
    %11 = vector.multi_reduction <add>, %10, %cst_4 [2] : vector<2x64x128xf32> to vector<2x64xf32>
    %12 = vector.shape_cast %11 : vector<2x64xf32> to vector<2x64x1xf32>
    %cst_5 = arith.constant 1.280000e+02 : f32
    %13 = vector.broadcast %cst_5 : f32 to vector<2x64x1xf32>
    %14 = arith.divf %12, %13 : vector<2x64x1xf32>
    %15 = vector.broadcast %7 : vector<2x64x1xf32> to vector<2x64x128xf32>
    %16 = arith.subf %3, %15 : vector<2x64x128xf32>
    %cst_6 = arith.constant 9.99999974E-6 : f32
    %17 = vector.broadcast %cst_6 : f32 to vector<2x64x1xf32>
    %18 = arith.addf %14, %17 : vector<2x64x1xf32>
    %19 = math.rsqrt %18 : vector<2x64x1xf32>
    %20 = vector.broadcast %19 : vector<2x64x1xf32> to vector<2x64x128xf32>
    %21 = arith.mulf %16, %20 : vector<2x64x128xf32>
    %22 = arith.index_cast %arg1 : i32 to index
    %c0_7 = arith.constant 0 : index
    %c0_8 = arith.constant 0 : index
    %c0_9 = arith.constant 0 : index
    %23 = vector.load %arg7[%22, %c0_7, %c0_8, %c0_9] : memref<4x2x1x128xf32, #tpu.memory_space<vmem>>, vector<1x2x1x128xf32>
    %24 = vector.shape_cast %23 : vector<1x2x1x128xf32> to vector<2x1x128xf32>
    %cst_10 = arith.constant 1.000000e+00 : f32
    %25 = vector.broadcast %cst_10 : f32 to vector<2x1x128xf32>
    %26 = arith.addf %25, %24 : vector<2x1x128xf32>
    %27 = vector.broadcast %26 : vector<2x1x128xf32> to vector<2x64x128xf32>
    %28 = arith.mulf %21, %27 : vector<2x64x128xf32>
    %29 = arith.index_cast %arg1 : i32 to index
    %c0_11 = arith.constant 0 : index
    %c0_12 = arith.constant 0 : index
    %c0_13 = arith.constant 0 : index
    %30 = vector.load %arg6[%29, %c0_11, %c0_12, %c0_13] : memref<4x2x1x128xf32, #tpu.memory_space<vmem>>, vector<1x2x1x128xf32>
    %31 = vector.shape_cast %30 : vector<1x2x1x128xf32> to vector<2x1x128xf32>
    %32 = vector.broadcast %31 : vector<2x1x128xf32> to vector<2x64x128xf32>
    %33 = arith.addf %28, %32 : vector<2x64x128xf32>
    %34 = vector.shape_cast %33 : vector<2x64x128xf32> to vector<128x128xf32>
    %35 = arith.truncf %34 : vector<128x128xf32> to vector<128x128xbf16>
    %c0_14 = arith.constant 0 : index
    %c0_15 = arith.constant 0 : index
    %c0_16 = arith.constant 0 : index
    %36 = vector.load %arg8[%c0_14, %c0_15, %c0_16] : memref<1x128x256xbf16, #tpu.memory_space<vmem>>, vector<1x128x256xbf16>
    %37 = vector.shape_cast %36 : vector<1x128x256xbf16> to vector<128x256xbf16>
    %cst_17 = arith.constant dense<0.000000e+00> : vector<128x256xf32>
    %38 = tpu.matmul %35, %37, %cst_17 {dimension_numbers = #tpu.dot_dimension_numbers<[1], [0], [0], [1], [0, 0, 1, 1], [], []>} : vector<128x128xbf16>, vector<128x256xbf16>, vector<128x256xf32> -> vector<128x256xf32>
    %39 = arith.index_cast %arg1 : i32 to index
    %c0_18 = arith.constant 0 : index
    %c0_19 = arith.constant 0 : index
    %40 = vector.load %arg9[%39, %c0_18, %c0_19] : memref<4x1x256xf32, #tpu.memory_space<vmem>>, vector<1x1x256xf32>
    %41 = vector.shape_cast %40 : vector<1x1x256xf32> to vector<1x256xf32>
    %42 = vector.broadcast %41 : vector<1x256xf32> to vector<128x256xf32>
    %43 = arith.addf %38, %42 : vector<128x256xf32>
    %cst_20 = arith.constant 5.000000e-01 : f32
    %44 = vector.broadcast %cst_20 : f32 to vector<128x256xf32>
    %45 = arith.mulf %44, %43 : vector<128x256xf32>
    %cst_21 = arith.constant 0.707106769 : f32
    %46 = vector.broadcast %cst_21 : f32 to vector<128x256xf32>
    %47 = arith.mulf %43, %46 : vector<128x256xf32>
    %48 = math.absf %47 : vector<128x256xf32>
    %cst_22 = arith.constant 0.327591091 : f32
    %49 = vector.broadcast %cst_22 : f32 to vector<128x256xf32>
    %50 = arith.mulf %49, %48 : vector<128x256xf32>
    %cst_23 = arith.constant 1.000000e+00 : f32
    %51 = vector.broadcast %cst_23 : f32 to vector<128x256xf32>
    %52 = arith.addf %51, %50 : vector<128x256xf32>
    %53 = tpu.reciprocal %52 {approx = true} : vector<128x256xf32> -> vector<128x256xf32>
    %cst_24 = arith.constant 1.06140542 : f32
    %54 = vector.broadcast %cst_24 : f32 to vector<128x256xf32>
    %55 = arith.mulf %54, %53 : vector<128x256xf32>
    %cst_25 = arith.constant -1.45315206 : f32
    %56 = vector.broadcast %cst_25 : f32 to vector<128x256xf32>
    %57 = arith.addf %55, %56 : vector<128x256xf32>
    %58 = arith.mulf %57, %53 : vector<128x256xf32>
    %cst_26 = arith.constant 1.42141378 : f32
    %59 = vector.broadcast %cst_26 : f32 to vector<128x256xf32>
    %60 = arith.addf %58, %59 : vector<128x256xf32>
    %61 = arith.mulf %60, %53 : vector<128x256xf32>
    %cst_27 = arith.constant -0.284496725 : f32
    %62 = vector.broadcast %cst_27 : f32 to vector<128x256xf32>
    %63 = arith.addf %61, %62 : vector<128x256xf32>
    %64 = arith.mulf %63, %53 : vector<128x256xf32>
    %cst_28 = arith.constant 0.254829586 : f32
    %65 = vector.broadcast %cst_28 : f32 to vector<128x256xf32>
    %66 = arith.addf %64, %65 : vector<128x256xf32>
    %67 = arith.mulf %66, %53 : vector<128x256xf32>
    %cst_29 = arith.constant 0.000000e+00 : f32
    %68 = vector.broadcast %cst_29 : f32 to vector<128x256xf32>
    %69 = arith.subf %68, %48 : vector<128x256xf32>
    %70 = arith.mulf %69, %48 : vector<128x256xf32>
    %71 = math.exp %70 : vector<128x256xf32>
    %72 = arith.mulf %67, %71 : vector<128x256xf32>
    %cst_30 = arith.constant 1.000000e+00 : f32
    %73 = vector.broadcast %cst_30 : f32 to vector<128x256xf32>
    %74 = arith.subf %73, %72 : vector<128x256xf32>
    %cst_31 = arith.constant 0.000000e+00 : f32
    %75 = vector.broadcast %cst_31 : f32 to vector<128x256xf32>
    %76 = arith.cmpf oge, %47, %75 : vector<128x256xf32>
    %cst_32 = arith.constant 0.000000e+00 : f32
    %77 = vector.broadcast %cst_32 : f32 to vector<128x256xf32>
    %78 = arith.subf %77, %74 : vector<128x256xf32>
    %79 = arith.select %76, %74, %78 : vector<128x256xi1>, vector<128x256xf32>
    %cst_33 = arith.constant 1.000000e+00 : f32
    %80 = vector.broadcast %cst_33 : f32 to vector<128x256xf32>
    %81 = arith.addf %80, %79 : vector<128x256xf32>
    %82 = arith.mulf %45, %81 : vector<128x256xf32>
    %83 = arith.truncf %82 : vector<128x256xf32> to vector<128x256xbf16>
    %c0_34 = arith.constant 0 : index
    %c0_35 = arith.constant 0 : index
    %c0_36 = arith.constant 0 : index
    %84 = vector.load %arg10[%c0_34, %c0_35, %c0_36] : memref<1x256x128xbf16, #tpu.memory_space<vmem>>, vector<1x256x128xbf16>
    %85 = vector.shape_cast %84 : vector<1x256x128xbf16> to vector<256x128xbf16>
    %cst_37 = arith.constant dense<0.000000e+00> : vector<128x128xf32>
    %86 = tpu.matmul %83, %85, %cst_37 {dimension_numbers = #tpu.dot_dimension_numbers<[1], [0], [0], [1], [0, 0, 1, 1], [], []>} : vector<128x256xbf16>, vector<256x128xbf16>, vector<128x128xf32> -> vector<128x128xf32>
    %87 = arith.index_cast %arg1 : i32 to index
    %c0_38 = arith.constant 0 : index
    %c0_39 = arith.constant 0 : index
    %88 = vector.load %arg11[%87, %c0_38, %c0_39] : memref<4x1x128xf32, #tpu.memory_space<vmem>>, vector<1x1x128xf32>
    %89 = vector.shape_cast %88 : vector<1x1x128xf32> to vector<1x128xf32>
    %90 = vector.broadcast %89 : vector<1x128xf32> to vector<128x128xf32>
    %91 = arith.addf %86, %90 : vector<128x128xf32>
    %92 = vector.shape_cast %91 : vector<128x128xf32> to vector<2x64x128xf32>
    %93 = arith.addf %3, %92 : vector<2x64x128xf32>
    %94 = arith.index_cast %arg1 : i32 to index
    %95 = memref.load %arg2[%94] : memref<4xi32, #tpu.memory_space<smem>>
    %c0_i32_40 = arith.constant 0 : i32
    %96 = arith.cmpi ne, %95, %c0_i32_40 : i32
    %97 = arith.extui %96 : i1 to i32
    %c0_i32_41 = arith.constant 0 : i32
    %98 = arith.cmpi ne, %97, %c0_i32_41 : i32
    scf.if %98 {
      %c0_44 = arith.constant 0 : index
      %c0_45 = arith.constant 0 : index
      %c0_46 = arith.constant 0 : index
      %c0_47 = arith.constant 0 : index
      %105 = vector.load %arg5[%c0_44, %c0_45, %c0_46, %c0_47] : memref<1x2x64x128xf32, #tpu.memory_space<vmem>>, vector<1x2x64x128xf32>
      %106 = vector.shape_cast %105 : vector<1x2x64x128xf32> to vector<2x64x128xf32>
      %107 = arith.addf %93, %106 : vector<2x64x128xf32>
      %c0_48 = arith.constant 0 : index
      %c0_49 = arith.constant 0 : index
      %c0_50 = arith.constant 0 : index
      %108 = vector.load %arg13[%c0_48, %c0_49, %c0_50] : memref<2x64x128xf32, #tpu.memory_space<vmem>>, vector<2x64x128xf32>
      tpu.vector_store %arg13[%c0_48, %c0_49, %c0_50], %107 {strides = array<i32>} : memref<2x64x128xf32, #tpu.memory_space<vmem>>, vector<2x64x128xf32>,
    } else {
    }
    %true = arith.constant true
    %99 = arith.xori %96, %true : i1
    %100 = arith.extui %99 : i1 to i32
    %c0_i32_42 = arith.constant 0 : i32
    %101 = arith.cmpi ne, %100, %c0_i32_42 : i32
    scf.if %101 {
      %c0_44 = arith.constant 0 : index
      %c0_45 = arith.constant 0 : index
      %c0_46 = arith.constant 0 : index
      %105 = vector.load %arg13[%c0_44, %c0_45, %c0_46] : memref<2x64x128xf32, #tpu.memory_space<vmem>>, vector<2x64x128xf32>
      tpu.vector_store %arg13[%c0_44, %c0_45, %c0_46], %93 {strides = array<i32>} : memref<2x64x128xf32, #tpu.memory_space<vmem>>, vector<2x64x128xf32>,
    } else {
    }
    %c3_i32 = arith.constant 3 : i32
    %102 = arith.cmpi eq, %arg1, %c3_i32 : i32
    %103 = arith.extui %102 : i1 to i32
    %c0_i32_43 = arith.constant 0 : i32
    %104 = arith.cmpi ne, %103, %c0_i32_43 : i32
    scf.if %104 {
      %c0_44 = arith.constant 0 : index
      %c0_45 = arith.constant 0 : index
      %c0_46 = arith.constant 0 : index
      %105 = vector.load %arg13[%c0_44, %c0_45, %c0_46] : memref<2x64x128xf32, #tpu.memory_space<vmem>>, vector<2x64x128xf32>
      %c0_47 = arith.constant 0 : index
      %c0_48 = arith.constant 0 : index
      %c0_49 = arith.constant 0 : index
      %106 = vector.load %arg12[%c0_47, %c0_48, %c0_49] : memref<2x64x256xf32, #tpu.memory_space<vmem>>, vector<2x64x128xf32>
      tpu.vector_store %arg12[%c0_47, %c0_48, %c0_49], %105 {strides = array<i32>} : memref<2x64x256xf32, #tpu.memory_space<vmem>>, vector<2x64x128xf32>,
      %c0_50 = arith.constant 0 : index
      %c0_51 = arith.constant 0 : index
      %c0_52 = arith.constant 0 : index
      %c0_53 = arith.constant 0 : index
      %107 = vector.load %arg5[%c0_50, %c0_51, %c0_52, %c0_53] : memref<1x2x64x128xf32, #tpu.memory_space<vmem>>, vector<1x2x64x128xf32>
      %108 = vector.shape_cast %107 : vector<1x2x64x128xf32> to vector<2x64x128xf32>
      %c0_54 = arith.constant 0 : index
      %c0_55 = arith.constant 0 : index
      %c128 = arith.constant 128 : index
      %109 = vector.load %arg12[%c0_54, %c0_55, %c128] : memref<2x64x256xf32, #tpu.memory_space<vmem>>, vector<2x64x128xf32>
      tpu.vector_store %arg12[%c0_54, %c0_55, %c128], %108 {strides = array<i32>} : memref<2x64x256xf32, #tpu.memory_space<vmem>>, vector<2x64x128xf32>,
    } else {
    }
    return
  }
  func.func @transform_0(%arg0: i32, %arg1: i32, %arg2: memref<4xi32, #tpu.memory_space<smem>>, %arg3: memref<4xi32, #tpu.memory_space<smem>>) -> (i32, i32, i32) {
    %c0_i32 = arith.constant 0 : i32
    %c0_i32_0 = arith.constant 0 : i32
    %c0_i32_1 = arith.constant 0 : i32
    return %arg0, %c0_i32, %c0_i32_0 : i32, i32, i32
  }
  func.func @transform_1(%arg0: i32, %arg1: i32, %arg2: memref<4xi32, #tpu.memory_space<smem>>, %arg3: memref<4xi32, #tpu.memory_space<smem>>) -> (i32, i32, i32, i32) {
    %0 = arith.index_cast %arg1 : i32 to index
    %1 = memref.load %arg3[%0] : memref<4xi32, #tpu.memory_space<smem>>
    %c0_i32 = arith.constant 0 : i32
    %c0_i32_0 = arith.constant 0 : i32
    %c0_i32_1 = arith.constant 0 : i32
    return %1, %arg0, %c0_i32, %c0_i32_0 : i32, i32, i32, i32
  }
  func.func @transform_2(%arg0: i32, %arg1: i32, %arg2: memref<4xi32, #tpu.memory_space<smem>>, %arg3: memref<4xi32, #tpu.memory_space<smem>>) -> (i32, i32, i32, i32) {
    %c0_i32 = arith.constant 0 : i32
    %c0_i32_0 = arith.constant 0 : i32
    %c0_i32_1 = arith.constant 0 : i32
    %c0_i32_2 = arith.constant 0 : i32
    return %c0_i32, %arg0, %c0_i32_0, %c0_i32_1 : i32, i32, i32, i32
  }
  func.func @transform_3(%arg0: i32, %arg1: i32, %arg2: memref<4xi32, #tpu.memory_space<smem>>, %arg3: memref<4xi32, #tpu.memory_space<smem>>) -> (i32, i32, i32, i32) {
    %c0_i32 = arith.constant 0 : i32
    %c0_i32_0 = arith.constant 0 : i32
    %c0_i32_1 = arith.constant 0 : i32
    %c0_i32_2 = arith.constant 0 : i32
    return %c0_i32, %arg0, %c0_i32_0, %c0_i32_1 : i32, i32, i32, i32
  }
  func.func @transform_4(%arg0: i32, %arg1: i32, %arg2: memref<4xi32, #tpu.memory_space<smem>>, %arg3: memref<4xi32, #tpu.memory_space<smem>>) -> (i32, i32, i32) {
    %c0_i32 = arith.constant 0 : i32
    %c0_i32_0 = arith.constant 0 : i32
    %c0_i32_1 = arith.constant 0 : i32
    return %arg1, %c0_i32, %c0_i32_0 : i32, i32, i32
  }
  func.func @transform_5(%arg0: i32, %arg1: i32, %arg2: memref<4xi32, #tpu.memory_space<smem>>, %arg3: memref<4xi32, #tpu.memory_space<smem>>) -> (i32, i32, i32) {
    %c0_i32 = arith.constant 0 : i32
    %c0_i32_0 = arith.constant 0 : i32
    %c0_i32_1 = arith.constant 0 : i32
    %c0_i32_2 = arith.constant 0 : i32
    return %c0_i32, %c0_i32_0, %c0_i32_1 : i32, i32, i32
  }
  func.func @transform_6(%arg0: i32, %arg1: i32, %arg2: memref<4xi32, #tpu.memory_space<smem>>, %arg3: memref<4xi32, #tpu.memory_space<smem>>) -> (i32, i32, i32) {
    %c0_i32 = arith.constant 0 : i32
    %c0_i32_0 = arith.constant 0 : i32
    %c0_i32_1 = arith.constant 0 : i32
    return %arg1, %c0_i32, %c0_i32_0 : i32, i32, i32
  }
  func.func @transform_7(%arg0: i32, %arg1: i32, %arg2: memref<4xi32, #tpu.memory_space<smem>>, %arg3: memref<4xi32, #tpu.memory_space<smem>>) -> (i32, i32, i32) {
    %c0_i32 = arith.constant 0 : i32
    %c0_i32_0 = arith.constant 0 : i32
    %c0_i32_1 = arith.constant 0 : i32
    %c0_i32_2 = arith.constant 0 : i32
    return %c0_i32, %c0_i32_0, %c0_i32_1 : i32, i32, i32
  }
  func.func @transform_8(%arg0: i32, %arg1: i32, %arg2: memref<4xi32, #tpu.memory_space<smem>>, %arg3: memref<4xi32, #tpu.memory_space<smem>>) -> (i32, i32, i32) {
    %c0_i32 = arith.constant 0 : i32
    %c0_i32_0 = arith.constant 0 : i32
    %c0_i32_1 = arith.constant 0 : i32
    return %arg0, %c0_i32, %c0_i32_0 : i32, i32, i32
  }
}

</mosaic_0001>

<llo_original>
// kernel: tpu_custom_call.1
$region0: #{tpu_custom_call.1}
  #allocation0 [shape = 'u32[]', space=smem, size = 0x4, offset = 0x4, fixed_abs, tag = 'smem constant byte address 0x4 - core index']
  #allocation1 [shape = 'u32[144,128]{1,0:T(1,128)}', space=vmem, size = 0x12000, scoped, tag = 'internal scratch']
  #allocation2 [shape = 'f32[2,64,128]{2,1,0:T(8,128)}', space=vmem, size = 0x10000, scoped, tag = 'scratch operand']
  #allocation3 [shape = 's32[1]{0}', space=sflag, size = 0x4, scoped, tag = 'scoped memory for tpu_custom_call.1']
  #allocation4 [shape = 'u8[512]{0}', space=smem, size = 0x200, scoped, tag = 'prefetched SMEM operand 0']
  #allocation5 [shape = 'u8[512]{0}', space=smem, size = 0x200, scoped, tag = 'prefetched SMEM operand 1']
  #allocation18 [shape = 's32[]', space=sflag, size = 0x4, offset = 0, fixed_abs, tag = 'sflag constant byte address 0x0 - dummy sync flag']
  #allocation20 [shape = 's32[]', space=sflag, size = 0x4, offset = 0, fixed_abs, tag = 'sflag constant byte address 0x0 - dummy sync flag']
  %s0 = inlined_call_operand.hbm [shape: s32[4], index: 0, kind: input, shape index: {}]
  %s1 = inlined_call_operand.hbm [shape: s32[4], index: 1, kind: input, shape index: {}]
  %s2 = inlined_call_operand.hbm [shape: f32[4,64,128], index: 2, kind: input, shape index: {}]
  %s3 = inlined_call_operand.hbm [shape: f32[3,4,64,128], index: 3, kind: input, shape index: {}]
  %s4 = inlined_call_operand.hbm [shape: f32[4,4,1,128], index: 4, kind: input, shape index: {}]
  %s5 = inlined_call_operand.hbm [shape: f32[4,4,1,128], index: 5, kind: input, shape index: {}]
  %s6 = inlined_call_operand.hbm [shape: bf16[4,128,256], index: 6, kind: input, shape index: {}]
  %s7 = inlined_call_operand.vmem [shape: f32[4,1,256], index: 7, kind: input, shape index: {}]
  %s8 = inlined_call_operand.hbm [shape: bf16[4,256,128], index: 8, kind: input, shape index: {}]
  %s9 = inlined_call_operand.vmem [shape: f32[4,1,128], index: 9, kind: input, shape index: {}]
  %s10 = inlined_call_operand.hbm [shape: f32[4,64,256], index: 10, kind: output, shape index: {}]
  %s11 = sld [smem:[#allocation0]]
  $region105: #{tpu_custom_call.1} parent=0
    _
  %s13 = ssub.s32 1, %s11
  %s14 = scalar_select 0, %s13, %s11
  %16 = dma.hbm_to_smem %s0, 16, [#allocation4], [#allocation3]
  %18 = dma.hbm_to_smem %s1, 16, [#allocation5], [#allocation3]
  %19 = dma.done [#allocation3], 32
  %20 = sfence
  $region1: #{tpu_custom_call.1} parent=0
    #allocation6 [shape = 'u8[131072]{0}', space=vmem, size = 0x20000, scoped, tag = 'input window, operand 2']
    #allocation7 [shape = 's32[2]{0}', space=sflag, size = 0x8, scoped, tag = 'scoped memory for tpu_custom_call.1']
    #allocation8 [shape = 's32[2]{0}', space=sflag, size = 0x8, scoped, tag = 'scoped memory for tpu_custom_call.1']
    #allocation9 [shape = 'u8[131072]{0}', space=vmem, size = 0x20000, scoped, tag = 'input window, operand 3']
    #allocation10 [shape = 's32[2]{0}', space=sflag, size = 0x8, scoped, tag = 'scoped memory for tpu_custom_call.1']
    #allocation11 [shape = 'u8[8192]{0}', space=vmem, size = 0x2000, scoped, tag = 'input window, operand 4']
    #allocation12 [shape = 'u8[8192]{0}', space=vmem, size = 0x2000, scoped, tag = 'input window, operand 5']
    #allocation13 [shape = 's32[2]{0}', space=sflag, size = 0x8, scoped, tag = 'scoped memory for tpu_custom_call.1']
    #allocation14 [shape = 'u8[131072]{0}', space=vmem, size = 0x20000, scoped, tag = 'input window, operand 6']
    #allocation15 [shape = 'u8[131072]{0}', space=vmem, size = 0x20000, scoped, tag = 'input window, operand 8']
    #allocation16 [shape = 's32[2]{0}', space=sflag, size = 0x8, scoped, tag = 'scoped memory for tpu_custom_call.1']
    #allocation17 [shape = 'u8[262144]{0}', space=vmem, size = 0x40000, scoped, tag = 'output window, operand 0']
    %21 = vsyncpa [#allocation7], 0
    %s22 = scalar_lea.sflag [#allocation7], 1
    %23 = vsyncpa %s22, 0
    %24 = vsyncpa [#allocation10], 0
    %s25 = scalar_lea.sflag [#allocation10], 1
    %26 = vsyncpa %s25, 0
    %27 = vsyncpa [#allocation13], 0
    %s28 = scalar_lea.sflag [#allocation13], 1
    %29 = vsyncpa %s28, 0
    %30 = vsyncpa [#allocation16], 0
    %s31 = scalar_lea.sflag [#allocation16], 1
    %32 = vsyncpa %s31, 0
    %33 = vsyncpa [#allocation8], 0
    %s34 = scalar_lea.sflag [#allocation8], 1
    %35 = vsyncpa %s34, 0
    loop: start=0, step=1, limit=10
    $region2: #{tpu_custom_call.1} parent=1 // loop_pre_header
      _
    $region3: #{tpu_custom_call.1} parent=1 // loop_header
      %s37 = sphi 0, %s41
      %p38 = scmp.ge.s32.totalorder %s37, 10
      %s44 = sphi 0, %s56
      %s45 = sphi 0, %s52
      %s46 = sphi 0, %s44
      %s47 = sphi 0, %s45
      %s48 = sphi 0, %s46
      %s49 = sphi 0, %s47
      %s59 = sphi 0, %s61
      %s62 = sphi 0, %s59
      %s63 = sphi 0, %s62
      %s79 = sphi 0, %s63
      %s89 = sphi 0, %s91
      %s92 = sphi 0, %s89
      %s93 = sphi 0, %s92
      %s109 = sphi 0, %s93
      %s115 = sphi 0, %s117
      %s118 = sphi 0, %s115
      %s119 = sphi 0, %s118
      %s135 = sphi 0, %s119
      %s141 = sphi 0, %s143
      %s144 = sphi 0, %s141
      %s145 = sphi 0, %s144
      %s161 = sphi 0, %s145
      %s167 = sphi 0, %s169
      %s170 = sphi 0, %s167
      %s171 = sphi 0, %s170
      %s187 = sphi 0, %s171
      %s191 = sphi 0, %s191
      %s193 = sphi 0, %s191
      %s194 = sphi 0, %s193
      %s208 = sphi 0, %s194
      %s214 = sphi 0, %s216
      %s217 = sphi 0, %s214
      %s218 = sphi 0, %s217
      %s234 = sphi 0, %s218
      %s238 = sphi 0, %s238
      %s240 = sphi 0, %s238
      %s241 = sphi 0, %s240
      %s255 = sphi 0, %s241
      %s261 = sphi 0, %s263
      %s264 = sphi 0, %s261
      %s265 = sphi 0, %s264
      %s281 = sphi 0, %s265
    $region4: #{tpu_custom_call.1} parent=1 // loop_header_branch
      %40 = sbr.rel (%p38) target = $region8
    $region5: #{tpu_custom_call.1} parent=1 // loop_body
      %s42 = ssub.s32 %s37, 1
      %s43 = ssub.s32 %s37, 2
      %s50 = sadd.s32 1, %s45
      %p51 = scmp.ge.s32.totalorder %s50, 4
      %s52 = scalar_select %p51, 0, %s50
      %s53 = sadd.s32 1, %s44
      %s54 = scalar_select %p51, %s53, %s44
      %p55 = scmp.ge.s32.totalorder %s54, 2
      %s56 = scalar_select %p55, 0, %s54
      %s57 = ssub.s32 %s44, %s56
      %p58 = scmp.eq.s32.totalorder %s57, 0
      %s60 = sadd.s32 %s59, 1
      %s61 = scalar_select %p58, %s59, %s60
      %p64 = pneg %p58
      %p65 = scmp.eq.s32.totalorder %s37, 7
      %p66 = por %p64, %p65
      %p67 = scmp.ne.s32.totalorder %s59, %s62
      %p68 = scmp.eq.s32.totalorder %s37, 0
      %p69 = por %p67, %p68
      %p70 = scmp.ne.s32.totalorder %s59, %s62
      %p71 = scmp.eq.s32.totalorder %s42, 7
      %p72 = por %p70, %p71
      %p73 = scmp.ne.s32.totalorder %s62, %s63
      %p74 = scmp.eq.s32.totalorder %s42, 0
      %p75 = por %p73, %p74
      %p76 = scmp.ne.s32.totalorder %s62, %s63
      %p77 = scmp.eq.s32.totalorder %s43, 7
      %p78 = por %p76, %p77
      %p80 = scmp.ne.s32.totalorder %s63, %s79
      %p81 = scmp.eq.s32.totalorder %s43, 0
      %p82 = por %p80, %p81
      %s83 = sld [smem:[#allocation5 + %s45]]
      %s84 = sld [smem:[#allocation5 + %s52]]
      %s85 = ssub.s32 %s83, %s84
      %s86 = ssub.s32 %s44, %s56
      %s87 = sor.u32 %s85, %s86
      %p88 = scmp.eq.s32.totalorder %s87, 0
      %s90 = sadd.s32 %s89, 1
      %s91 = scalar_select %p88, %s89, %s90
      %p94 = pneg %p88
      %p95 = scmp.eq.s32.totalorder %s37, 7
      %p96 = por %p94, %p95
      %p97 = scmp.ne.s32.totalorder %s89, %s92
      %p98 = scmp.eq.s32.totalorder %s37, 0
      %p99 = por %p97, %p98
      %p100 = scmp.ne.s32.totalorder %s89, %s92
      %p101 = scmp.eq.s32.totalorder %s42, 7
      %p102 = por %p100, %p101
      %p103 = scmp.ne.s32.totalorder %s92, %s93
      %p104 = scmp.eq.s32.totalorder %s42, 0
      %p105 = por %p103, %p104
      %p106 = scmp.ne.s32.totalorder %s92, %s93
      %p107 = scmp.eq.s32.totalorder %s43, 7
      %p108 = por %p106, %p107
      %p110 = scmp.ne.s32.totalorder %s93, %s109
      %p111 = scmp.eq.s32.totalorder %s43, 0
      %p112 = por %p110, %p111
      %s113 = ssub.s32 %s44, %s56
      %p114 = scmp.eq.s32.totalorder %s113, 0
      %s116 = sadd.s32 %s115, 1
      %s117 = scalar_select %p114, %s115, %s116
      %p120 = pneg %p114
      %p121 = scmp.eq.s32.totalorder %s37, 7
      %p122 = por %p120, %p121
      %p123 = scmp.ne.s32.totalorder %s115, %s118
      %p124 = scmp.eq.s32.totalorder %s37, 0
      %p125 = por %p123, %p124
      %p126 = scmp.ne.s32.totalorder %s115, %s118
      %p127 = scmp.eq.s32.totalorder %s42, 7
      %p128 = por %p126, %p127
      %p129 = scmp.ne.s32.totalorder %s118, %s119
      %p130 = scmp.eq.s32.totalorder %s42, 0
      %p131 = por %p129, %p130
      %p132 = scmp.ne.s32.totalorder %s118, %s119
      %p133 = scmp.eq.s32.totalorder %s43, 7
      %p134 = por %p132, %p133
      %p136 = scmp.ne.s32.totalorder %s119, %s135
      %p137 = scmp.eq.s32.totalorder %s43, 0
      %p138 = por %p136, %p137
      %s139 = ssub.s32 %s44, %s56
      %p140 = scmp.eq.s32.totalorder %s139, 0
      %s142 = sadd.s32 %s141, 1
      %s143 = scalar_select %p140, %s141, %s142
      %p146 = pneg %p140
      %p147 = scmp.eq.s32.totalorder %s37, 7
      %p148 = por %p146, %p147
      %p149 = scmp.ne.s32.totalorder %s141, %s144
      %p150 = scmp.eq.s32.totalorder %s37, 0
      %p151 = por %p149, %p150
      %p152 = scmp.ne.s32.totalorder %s141, %s144
      %p153 = scmp.eq.s32.totalorder %s42, 7
      %p154 = por %p152, %p153
      %p155 = scmp.ne.s32.totalorder %s144, %s145
      %p156 = scmp.eq.s32.totalorder %s42, 0
      %p157 = por %p155, %p156
      %p158 = scmp.ne.s32.totalorder %s144, %s145
      %p159 = scmp.eq.s32.totalorder %s43, 7
      %p160 = por %p158, %p159
      %p162 = scmp.ne.s32.totalorder %s145, %s161
      %p163 = scmp.eq.s32.totalorder %s43, 0
      %p164 = por %p162, %p163
      %s165 = ssub.s32 %s45, %s52
      %p166 = scmp.eq.s32.totalorder %s165, 0
      %s168 = sadd.s32 %s167, 1
      %s169 = scalar_select %p166, %s167, %s168
      %p172 = pneg %p166
      %p173 = scmp.eq.s32.totalorder %s37, 7
      %p174 = por %p172, %p173
      %p175 = scmp.ne.s32.totalorder %s167, %s170
      %p176 = scmp.eq.s32.totalorder %s37, 0
      %p177 = por %p175, %p176
      %p178 = scmp.ne.s32.totalorder %s167, %s170
      %p179 = scmp.eq.s32.totalorder %s42, 7
      %p180 = por %p178, %p179
      %p181 = scmp.ne.s32.totalorder %s170, %s171
      %p182 = scmp.eq.s32.totalorder %s42, 0
      %p183 = por %p181, %p182
      %p184 = scmp.ne.s32.totalorder %s170, %s171
      %p185 = scmp.eq.s32.totalorder %s43, 7
      %p186 = por %p184, %p185
      %p188 = scmp.ne.s32.totalorder %s171, %s187
      %p189 = scmp.eq.s32.totalorder %s43, 0
      %p190 = por %p188, %p189
      %s192 = sadd.s32 %s191, 1
      %p195 = scmp.eq.s32.totalorder %s37, 7
      %p196 = scmp.ne.s32.totalorder %s191, %s193
      %p197 = scmp.eq.s32.totalorder %s37, 0
      %p198 = por %p196, %p197
      %p199 = scmp.ne.s32.totalorder %s191, %s193
      %p200 = scmp.eq.s32.totalorder %s42, 7
      %p201 = por %p199, %p200
      %p202 = scmp.ne.s32.totalorder %s193, %s194
      %p203 = scmp.eq.s32.totalorder %s42, 0
      %p204 = por %p202, %p203
      %p205 = scmp.ne.s32.totalorder %s193, %s194
      %p206 = scmp.eq.s32.totalorder %s43, 7
      %p207 = por %p205, %p206
      %p209 = scmp.ne.s32.totalorder %s194, %s208
      %p210 = scmp.eq.s32.totalorder %s43, 0
      %p211 = por %p209, %p210
      %s212 = ssub.s32 %s45, %s52
      %p213 = scmp.eq.s32.totalorder %s212, 0
      %s215 = sadd.s32 %s214, 1
      %s216 = scalar_select %p213, %s214, %s215
      %p219 = pneg %p213
      %p220 = scmp.eq.s32.totalorder %s37, 7
      %p221 = por %p219, %p220
      %p222 = scmp.ne.s32.totalorder %s214, %s217
      %p223 = scmp.eq.s32.totalorder %s37, 0
      %p224 = por %p222, %p223
      %p225 = scmp.ne.s32.totalorder %s214, %s217
      %p226 = scmp.eq.s32.totalorder %s42, 7
      %p227 = por %p225, %p226
      %p228 = scmp.ne.s32.totalorder %s217, %s218
      %p229 = scmp.eq.s32.totalorder %s42, 0
      %p230 = por %p228, %p229
      %p231 = scmp.ne.s32.totalorder %s217, %s218
      %p232 = scmp.eq.s32.totalorder %s43, 7
      %p233 = por %p231, %p232
      %p235 = scmp.ne.s32.totalorder %s218, %s234
      %p236 = scmp.eq.s32.totalorder %s43, 0
      %p237 = por %p235, %p236
      %s239 = sadd.s32 %s238, 1
      %p242 = scmp.eq.s32.totalorder %s37, 7
      %p243 = scmp.ne.s32.totalorder %s238, %s240
      %p244 = scmp.eq.s32.totalorder %s37, 0
      %p245 = por %p243, %p244
      %p246 = scmp.ne.s32.totalorder %s238, %s240
      %p247 = scmp.eq.s32.totalorder %s42, 7
      %p248 = por %p246, %p247
      %p249 = scmp.ne.s32.totalorder %s240, %s241
      %p250 = scmp.eq.s32.totalorder %s42, 0
      %p251 = por %p249, %p250
      %p252 = scmp.ne.s32.totalorder %s240, %s241
      %p253 = scmp.eq.s32.totalorder %s43, 7
      %p254 = por %p252, %p253
      %p256 = scmp.ne.s32.totalorder %s241, %s255
      %p257 = scmp.eq.s32.totalorder %s43, 0
      %p258 = por %p256, %p257
      %s259 = ssub.s32 %s44, %s56
      %p260 = scmp.eq.s32.totalorder %s259, 0
      %s262 = sadd.s32 %s261, 1
      %s263 = scalar_select %p260, %s261, %s262
      %p266 = pneg %p260
      %p267 = scmp.eq.s32.totalorder %s37, 7
      %p268 = por %p266, %p267
      %p269 = scmp.ne.s32.totalorder %s261, %s264
      %p270 = scmp.eq.s32.totalorder %s37, 0
      %p271 = por %p269, %p270
      %p272 = scmp.ne.s32.totalorder %s261, %s264
      %p273 = scmp.eq.s32.totalorder %s42, 7
      %p274 = por %p272, %p273
      %p275 = scmp.ne.s32.totalorder %s264, %s265
      %p276 = scmp.eq.s32.totalorder %s42, 0
      %p277 = por %p275, %p276
      %p278 = scmp.ne.s32.totalorder %s264, %s265
      %p279 = scmp.eq.s32.totalorder %s43, 7
      %p280 = por %p278, %p279
      %p282 = scmp.ne.s32.totalorder %s265, %s281
      %p283 = scmp.eq.s32.totalorder %s43, 0
      %p284 = por %p282, %p283
      %p285 = scmp.le.s32.totalorder 1, %s37
      %p286 = scmp.lt.s32.totalorder %s37, 9
      %p287 = pnand %p285, %p286
      %p288 = pneg %p287
      // Predicated region
      $region9: #{tpu_custom_call.1} parent=5 // pred_check
        _
      $region10: #{tpu_custom_call.1} parent=5 // pred_check_branch
        %290 = sbr.rel (%p287) target = $region12
      $region11: #{tpu_custom_call.1} parent=5 // pred_region
        %s291 = ssub.s32 %s37, 1
        // Predicated region
        $region13: #{tpu_custom_call.1} parent=11 // pred_check
          %p292 = pneg %p204
        $region14: #{tpu_custom_call.1} parent=11 // pred_check_branch
          %294 = sbr.rel (%p292) target = $region16
        $region15: #{tpu_custom_call.1} parent=11 // pred_region
          _
        $region16: #{tpu_custom_call.1} parent=11 // pred_fallthru
          _
        // Predicated region
        $region17: #{tpu_custom_call.1} parent=11 // pred_check
          %p295 = pneg %p251
        $region18: #{tpu_custom_call.1} parent=11 // pred_check_branch
          %297 = sbr.rel (%p295) target = $region20
        $region19: #{tpu_custom_call.1} parent=11 // pred_region
          _
        $region20: #{tpu_custom_call.1} parent=11 // pred_fallthru
          _
      $region12: #{tpu_custom_call.1} parent=5 // pred_fallthru
        _
      %p298 = scmp.lt.s32.totalorder %s37, 8
      // Predicated region
      $region21: #{tpu_custom_call.1} parent=5 // pred_check
        %p299 = pneg %p298
      $region22: #{tpu_custom_call.1} parent=5 // pred_check_branch
        %301 = sbr.rel (%p299) target = $region24
      $region23: #{tpu_custom_call.1} parent=5 // pred_region
        // Predicated region
        $region25: #{tpu_custom_call.1} parent=23 // pred_check
          %p302 = pneg %p69
        $region26: #{tpu_custom_call.1} parent=23 // pred_check_branch
          %304 = sbr.rel (%p302) target = $region28
        $region27: #{tpu_custom_call.1} parent=23 // pred_region
          %s305 = sand.u32 %s59, 1
          %s306 = scalar_lea.sflag [#allocation7], %s305
          %s307 = sand.u32 %s59, 1
          %s308 = smul.addr %s307, 128
          %s309 = scalar_lea.vmem [#allocation6], %s308
          %s310 = smul.u32 2, %s44
          %s312 = ssub.s32 2048, 2048
          %313 = vsyncadd %s306, %s312
          %s314 = smul.addr %s310, 8
          %s315 = smul.addr %s314, 128
          %s316 = scalar_lea.hbm %s2, %s315
          %s317 = sshll.u32 %s309, 4
          %s318 = int_to_ptr.vmem [resolvable:$true] %s317
          %323 = dma.hbm_to_vmem [thread:$0]  %s316, 2048, %s318, %s306, 128, 128, 8
        $region28: #{tpu_custom_call.1} parent=23 // pred_fallthru
          _
        // Predicated region
        $region29: #{tpu_custom_call.1} parent=23 // pred_check
          %p324 = pneg %p99
        $region30: #{tpu_custom_call.1} parent=23 // pred_check_branch
          %326 = sbr.rel (%p324) target = $region32
        $region31: #{tpu_custom_call.1} parent=23 // pred_region
          %s327 = sand.u32 %s37, 1
          %s328 = scalar_lea.sflag [#allocation10], %s327
          %s329 = sand.u32 %s89, 1
          %s330 = smul.addr %s329, 128
          %s331 = scalar_lea.vmem [#allocation9], %s330
          %s332 = sld [smem:[#allocation5 + %s45]]
          %s333 = smul.u32 2, %s44
          %s335 = ssub.s32 2048, 2048
          %336 = vsyncadd %s328, %s335
          %s337 = smul.addr %s333, 8
          %s338 = smul.addr %s332, 32
          %s339 = sadd.s32 %s337, %s338
          %s340 = smul.addr %s339, 128
          %s341 = scalar_lea.hbm %s3, %s340
          %s342 = sshll.u32 %s331, 4
          %s343 = int_to_ptr.vmem [resolvable:$true] %s342
          %348 = dma.hbm_to_vmem [thread:$0]  %s341, 2048, %s343, %s328, 128, 128, 8
        $region32: #{tpu_custom_call.1} parent=23 // pred_fallthru
          _
        // Predicated region
        $region33: #{tpu_custom_call.1} parent=23 // pred_check
          %p349 = pneg %p125
        $region34: #{tpu_custom_call.1} parent=23 // pred_check_branch
          %351 = sbr.rel (%p349) target = $region36
        $region35: #{tpu_custom_call.1} parent=23 // pred_region
          #allocation19 [shape = 'u32[6]{0}', space=smem, size = 0x18, scoped, tag = 'DMA stride descriptor']
          %s352 = sand.u32 %s37, 1
          %s353 = scalar_lea.sflag [#allocation10], %s352
          %s354 = sand.u32 %s115, 1
          %s355 = smul.addr %s354, 8
          %s356 = scalar_lea.vmem [#allocation11], %s355
          %s357 = smul.u32 2, %s44
          %s359 = ssub.s32 128, 128
          %360 = vsyncadd %s353, %s359
          %s361 = smul.addr %s357, 16
          %s362 = scalar_lea.hbm %s4, %s361
          %s364 = sshll.u32 1, 14
          %s365 = sxor.u32 4294967295, %s364
          %s367 = sld [smem:[#allocation0]]
          %s368 = sadd.s32 2, %s367
          %s370 = sshll.u32 7, 26
          %s371 = sxor.u32 4294967295, %s370
          %s372 = sand.u32 0, %s371
          %s373 = sshll.u32 %s368, 26
          %s374 = sor.u32 %s372, %s373
          %s375 = sshll.u32 %s356, 4
          %s376 = int_to_ptr.vmem [resolvable:$true] %s375
          %382 = sst [smem:[#allocation19]] 64
          %s383 = scalar_lea.smem [#allocation19], 1
          %384 = sst [smem:[%s383]] 32
          %s385 = scalar_lea.smem [#allocation19], 2
          %386 = sst [smem:[%s385]] 2
          %s387 = scalar_lea.smem [#allocation19], 3
          %388 = sst [smem:[%s387]] 16
          %s389 = scalar_lea.smem [#allocation19], 4
          %390 = sst [smem:[%s389]] 16
          %s391 = scalar_lea.smem [#allocation19], 5
          %392 = sst [smem:[%s391]] 1
          %394 = dma.general %s362, 128, %s376, %s353, 131072, [#allocation19], %s374, 0
        $region36: #{tpu_custom_call.1} parent=23 // pred_fallthru
          _
        // Predicated region
        $region37: #{tpu_custom_call.1} parent=23 // pred_check
          %p395 = pneg %p151
        $region38: #{tpu_custom_call.1} parent=23 // pred_check_branch
          %397 = sbr.rel (%p395) target = $region40
        $region39: #{tpu_custom_call.1} parent=23 // pred_region
          #allocation21 [shape = 'u32[6]{0}', space=smem, size = 0x18, scoped, tag = 'DMA stride descriptor']
          %s398 = sand.u32 %s37, 1
          %s399 = scalar_lea.sflag [#allocation13], %s398
          %s400 = sand.u32 %s141, 1
          %s401 = smul.addr %s400, 8
          %s402 = scalar_lea.vmem [#allocation12], %s401
          %s403 = smul.u32 2, %s44
          %s405 = ssub.s32 128, 128
          %406 = vsyncadd %s399, %s405
          %s407 = smul.addr %s403, 16
          %s408 = scalar_lea.hbm %s5, %s407
          %s410 = sshll.u32 1, 14
          %s411 = sxor.u32 4294967295, %s410
          %s413 = sld [smem:[#allocation0]]
          %s414 = sadd.s32 2, %s413
          %s416 = sshll.u32 7, 26
          %s417 = sxor.u32 4294967295, %s416
          %s418 = sand.u32 0, %s417
          %s419 = sshll.u32 %s414, 26
          %s420 = sor.u32 %s418, %s419
          %s421 = sshll.u32 %s402, 4
          %s422 = int_to_ptr.vmem [resolvable:$true] %s421
          %428 = sst [smem:[#allocation21]] 64
          %s429 = scalar_lea.smem [#allocation21], 1
          %430 = sst [smem:[%s429]] 32
          %s431 = scalar_lea.smem [#allocation21], 2
          %432 = sst [smem:[%s431]] 2
          %s433 = scalar_lea.smem [#allocation21], 3
          %434 = sst [smem:[%s433]] 16
          %s435 = scalar_lea.smem [#allocation21], 4
          %436 = sst [smem:[%s435]] 16
          %s437 = scalar_lea.smem [#allocation21], 5
          %438 = sst [smem:[%s437]] 1
          %440 = dma.general %s408, 128, %s422, %s399, 131072, [#allocation21], %s420, 0
        $region40: #{tpu_custom_call.1} parent=23 // pred_fallthru
          _
        // Predicated region
        $region41: #{tpu_custom_call.1} parent=23 // pred_check
          %p441 = pneg %p177
        $region42: #{tpu_custom_call.1} parent=23 // pred_check_branch
          %443 = sbr.rel (%p441) target = $region44
        $region43: #{tpu_custom_call.1} parent=23 // pred_region
          %s444 = sand.u32 %s37, 1
          %s445 = scalar_lea.sflag [#allocation13], %s444
          %s446 = sand.u32 %s167, 1
          %s447 = smul.addr %s446, 128
          %s448 = scalar_lea.vmem [#allocation14], %s447
          %s450 = ssub.s32 2048, 2048
          %451 = vsyncadd %s445, %s450
          %s452 = smul.addr %s45, 32
          %s453 = smul.addr %s452, 64
          %s454 = scalar_lea.hbm %s6, %s453
          %s455 = sshll.u32 %s448, 4
          %s456 = int_to_ptr.vmem [resolvable:$true] %s455
          %461 = dma.hbm_to_vmem [thread:$0]  %s454, 2048, %s456, %s445, 128, 128, 8
        $region44: #{tpu_custom_call.1} parent=23 // pred_fallthru
          _
        // Predicated region
        $region45: #{tpu_custom_call.1} parent=23 // pred_check
          %p462 = pneg %p224
        $region46: #{tpu_custom_call.1} parent=23 // pred_check_branch
          %464 = sbr.rel (%p462) target = $region48
        $region47: #{tpu_custom_call.1} parent=23 // pred_region
          %s465 = sand.u32 %s214, 1
          %s466 = scalar_lea.sflag [#allocation16], %s465
          %s467 = sand.u32 %s214, 1
          %s468 = smul.addr %s467, 128
          %s469 = scalar_lea.vmem [#allocation15], %s468
          %s471 = ssub.s32 2048, 2048
          %472 = vsyncadd %s466, %s471
          %s473 = smul.addr %s45, 32
          %s474 = smul.addr %s473, 64
          %s475 = scalar_lea.hbm %s8, %s474
          %s476 = sshll.u32 %s469, 4
          %s477 = int_to_ptr.vmem [resolvable:$true] %s476
          %482 = dma.hbm_to_vmem [thread:$0]  %s475, 2048, %s477, %s466, 64, 64, 4
        $region48: #{tpu_custom_call.1} parent=23 // pred_fallthru
          _
      $region24: #{tpu_custom_call.1} parent=5 // pred_fallthru
        _
      %p483 = scmp.le.s32.totalorder 1, %s37
      %p484 = scmp.lt.s32.totalorder %s37, 9
      %p485 = pnand %p483, %p484
      %p486 = pneg %p485
      // Predicated region
      $region49: #{tpu_custom_call.1} parent=5 // pred_check
        _
      $region50: #{tpu_custom_call.1} parent=5 // pred_check_branch
        %488 = sbr.rel (%p485) target = $region52
      $region51: #{tpu_custom_call.1} parent=5 // pred_region
        %s489 = ssub.s32 %s37, 1
        %s490 = sand.u32 %s62, 1
        %s491 = scalar_lea.sflag [#allocation7], %s490
        %s492 = sand.u32 %s62, 1
        %s493 = smul.addr %s492, 128
        %s494 = scalar_lea.vmem [#allocation6], %s493
        // Predicated region
        $region53: #{tpu_custom_call.1} parent=51 // pred_check
          %p495 = pneg %p75
        $region54: #{tpu_custom_call.1} parent=51 // pred_check_branch
          %497 = sbr.rel (%p495) target = $region56
        $region55: #{tpu_custom_call.1} parent=51 // pred_region
          %498 = dma.done %s491, 2048
        $region56: #{tpu_custom_call.1} parent=51 // pred_fallthru
          _
        %s499 = sand.u32 %s42, 1
        %s500 = scalar_lea.sflag [#allocation10], %s499
        %s501 = sand.u32 %s92, 1
        %s502 = smul.addr %s501, 128
        %s503 = scalar_lea.vmem [#allocation9], %s502
        // Predicated region
        $region57: #{tpu_custom_call.1} parent=51 // pred_check
          %p504 = pneg %p105
        $region58: #{tpu_custom_call.1} parent=51 // pred_check_branch
          %506 = sbr.rel (%p504) target = $region60
        $region59: #{tpu_custom_call.1} parent=51 // pred_region
          %507 = dma.done %s500, 2048
        $region60: #{tpu_custom_call.1} parent=51 // pred_fallthru
          _
        %s508 = sand.u32 %s42, 1
        %s509 = scalar_lea.sflag [#allocation10], %s508
        %s510 = sand.u32 %s118, 1
        %s511 = smul.addr %s510, 8
        %s512 = scalar_lea.vmem [#allocation11], %s511
        // Predicated region
        $region61: #{tpu_custom_call.1} parent=51 // pred_check
          %p513 = pneg %p131
        $region62: #{tpu_custom_call.1} parent=51 // pred_check_branch
          %515 = sbr.rel (%p513) target = $region64
        $region63: #{tpu_custom_call.1} parent=51 // pred_region
          %516 = dma.done %s509, 128
        $region64: #{tpu_custom_call.1} parent=51 // pred_fallthru
          _
        %s517 = sand.u32 %s42, 1
        %s518 = scalar_lea.sflag [#allocation13], %s517
        %s519 = sand.u32 %s144, 1
        %s520 = smul.addr %s519, 8
        %s521 = scalar_lea.vmem [#allocation12], %s520
        // Predicated region
        $region65: #{tpu_custom_call.1} parent=51 // pred_check
          %p522 = pneg %p157
        $region66: #{tpu_custom_call.1} parent=51 // pred_check_branch
          %524 = sbr.rel (%p522) target = $region68
        $region67: #{tpu_custom_call.1} parent=51 // pred_region
          %525 = dma.done %s518, 128
        $region68: #{tpu_custom_call.1} parent=51 // pred_fallthru
          _
        %s526 = sand.u32 %s42, 1
        %s527 = scalar_lea.sflag [#allocation13], %s526
        %s528 = sand.u32 %s170, 1
        %s529 = smul.addr %s528, 128
        %s530 = scalar_lea.vmem [#allocation14], %s529
        // Predicated region
        $region69: #{tpu_custom_call.1} parent=51 // pred_check
          %p531 = pneg %p183
        $region70: #{tpu_custom_call.1} parent=51 // pred_check_branch
          %533 = sbr.rel (%p531) target = $region72
        $region71: #{tpu_custom_call.1} parent=51 // pred_region
          %534 = dma.done %s527, 2048
        $region72: #{tpu_custom_call.1} parent=51 // pred_fallthru
          _
        %s535 = sand.u32 %s217, 1
        %s536 = scalar_lea.sflag [#allocation16], %s535
        %s537 = sand.u32 %s217, 1
        %s538 = smul.addr %s537, 128
        %s539 = scalar_lea.vmem [#allocation15], %s538
        // Predicated region
        $region73: #{tpu_custom_call.1} parent=51 // pred_check
          %p540 = pneg %p230
        $region74: #{tpu_custom_call.1} parent=51 // pred_check_branch
          %542 = sbr.rel (%p540) target = $region76
        $region75: #{tpu_custom_call.1} parent=51 // pred_region
          %543 = dma.done %s536, 2048
        $region76: #{tpu_custom_call.1} parent=51 // pred_fallthru
          _
        %s544 = sand.u32 %s62, 1
        %s545 = scalar_lea.sflag [#allocation7], %s544
        %s546 = sand.u32 %s62, 1
        %s547 = smul.addr %s546, 128
        %s548 = scalar_lea.vmem [#allocation6], %s547
        %p549 = pneg %p75
        %p550 = pneg %p72
        %s551 = sand.u32 %s42, 1
        %s552 = scalar_lea.sflag [#allocation10], %s551
        %s553 = sand.u32 %s92, 1
        %s554 = smul.addr %s553, 128
        %s555 = scalar_lea.vmem [#allocation9], %s554
        %p556 = pneg %p105
        %p557 = pneg %p102
        %s558 = sand.u32 %s42, 1
        %s559 = scalar_lea.sflag [#allocation10], %s558
        %s560 = sand.u32 %s118, 1
        %s561 = smul.addr %s560, 8
        %s562 = scalar_lea.vmem [#allocation11], %s561
        %p563 = pneg %p131
        %p564 = pneg %p128
        %s565 = sand.u32 %s42, 1
        %s566 = scalar_lea.sflag [#allocation13], %s565
        %s567 = sand.u32 %s144, 1
        %s568 = smul.addr %s567, 8
        %s569 = scalar_lea.vmem [#allocation12], %s568
        %p570 = pneg %p157
        %p571 = pneg %p154
        %s572 = sand.u32 %s42, 1
        %s573 = scalar_lea.sflag [#allocation13], %s572
        %s574 = sand.u32 %s170, 1
        %s575 = smul.addr %s574, 128
        %s576 = scalar_lea.vmem [#allocation14], %s575
        %p577 = pneg %p183
        %p578 = pneg %p180
        %p579 = pneg %p204
        %p580 = pneg %p201
        %s581 = sand.u32 %s217, 1
        %s582 = scalar_lea.sflag [#allocation16], %s581
        %s583 = sand.u32 %s217, 1
        %s584 = smul.addr %s583, 128
        %s585 = scalar_lea.vmem [#allocation15], %s584
        %p586 = pneg %p230
        %p587 = pneg %p227
        %p588 = pneg %p251
        %p589 = pneg %p248
        %p590 = pneg %p277
        %p591 = pneg %p274
        %s592 = sand.u32 %s264, 1
        %s593 = scalar_lea.sflag [#allocation8], %s592
        %s594 = sand.u32 %s264, 1
        %s595 = smul.addr %s594, 256
        %s596 = scalar_lea.vmem [#allocation17], %s595
        %s597 = smul.u32 2, %s46
        %s598 = sld [smem:[#allocation5 + %s47]]
        %s599 = smul.u32 2, %s46
        %s600 = smul.u32 2, %s46
        %s601 = smul.u32 2, %s46
        %s602 = smul.u32 2, %s46
        %p604 = scmp.eq.s32.totalorder %s47, 0
        // Predicated region
        $region77: #{tpu_custom_call.1} parent=51 // pred_check
          %p605 = pneg %p604
        $region78: #{tpu_custom_call.1} parent=51 // pred_check_branch
          %607 = sbr.rel (%p605) target = $region80
        $region79: #{tpu_custom_call.1} parent=51 // pred_region
          %v608 = vld [vmem:[%s494] sm:$0xff]
          %v609 = vld [vmem:[%s494 + $0x8] sm:$0xff]
          %v610 = vld [vmem:[%s494 + $0x10] sm:$0xff]
          %v611 = vld [vmem:[%s494 + $0x18] sm:$0xff]
          %v612 = vld [vmem:[%s494 + $0x20] sm:$0xff]
          %v613 = vld [vmem:[%s494 + $0x28] sm:$0xff]
          %v614 = vld [vmem:[%s494 + $0x30] sm:$0xff]
          %v615 = vld [vmem:[%s494 + $0x38] sm:$0xff]
          %v616 = vld [vmem:[%s494 + $0x40] sm:$0xff]
          %v617 = vld [vmem:[%s494 + $0x48] sm:$0xff]
          %v618 = vld [vmem:[%s494 + $0x50] sm:$0xff]
          %v619 = vld [vmem:[%s494 + $0x58] sm:$0xff]
          %v620 = vld [vmem:[%s494 + $0x60] sm:$0xff]
          %v621 = vld [vmem:[%s494 + $0x68] sm:$0xff]
          %v622 = vld [vmem:[%s494 + $0x70] sm:$0xff]
          %v623 = vld [vmem:[%s494 + $0x78] sm:$0xff]
          %624 = vst [vmem:[#allocation2] sm:$0xff] %v608
          %625 = vst [vmem:[#allocation2 + $0x8] sm:$0xff] %v609
          %626 = vst [vmem:[#allocation2 + $0x10] sm:$0xff] %v610
          %627 = vst [vmem:[#allocation2 + $0x18] sm:$0xff] %v611
          %628 = vst [vmem:[#allocation2 + $0x20] sm:$0xff] %v612
          %629 = vst [vmem:[#allocation2 + $0x28] sm:$0xff] %v613
          %630 = vst [vmem:[#allocation2 + $0x30] sm:$0xff] %v614
          %631 = vst [vmem:[#allocation2 + $0x38] sm:$0xff] %v615
          %632 = vst [vmem:[#allocation2 + $0x40] sm:$0xff] %v616
          %633 = vst [vmem:[#allocation2 + $0x48] sm:$0xff] %v617
          %634 = vst [vmem:[#allocation2 + $0x50] sm:$0xff] %v618
          %635 = vst [vmem:[#allocation2 + $0x58] sm:$0xff] %v619
          %636 = vst [vmem:[#allocation2 + $0x60] sm:$0xff] %v620
          %637 = vst [vmem:[#allocation2 + $0x68] sm:$0xff] %v621
          %638 = vst [vmem:[#allocation2 + $0x70] sm:$0xff] %v622
          %639 = vst [vmem:[#allocation2 + $0x78] sm:$0xff] %v623
        $region80: #{tpu_custom_call.1} parent=51 // pred_fallthru
          _
        %v640 = vld [vmem:[#allocation2] sm:$0xff]
        %v641 = vld [vmem:[#allocation2 + $0x8] sm:$0xff]
        %v642 = vld [vmem:[#allocation2 + $0x10] sm:$0xff]
        %v643 = vld [vmem:[#allocation2 + $0x18] sm:$0xff]
        %v644 = vld [vmem:[#allocation2 + $0x20] sm:$0xff]
        %v645 = vld [vmem:[#allocation2 + $0x28] sm:$0xff]
        %v646 = vld [vmem:[#allocation2 + $0x30] sm:$0xff]
        %v647 = vld [vmem:[#allocation2 + $0x38] sm:$0xff]
        %v648 = vld [vmem:[#allocation2 + $0x40] sm:$0xff]
        %v649 = vld [vmem:[#allocation2 + $0x48] sm:$0xff]
        %v650 = vld [vmem:[#allocation2 + $0x50] sm:$0xff]
        %v651 = vld [vmem:[#allocation2 + $0x58] sm:$0xff]
        %v652 = vld [vmem:[#allocation2 + $0x60] sm:$0xff]
        %v653 = vld [vmem:[#allocation2 + $0x68] sm:$0xff]
        %v654 = vld [vmem:[#allocation2 + $0x70] sm:$0xff]
        %v655 = vld [vmem:[#allocation2 + $0x78] sm:$0xff]
        %656 = vadd.xlane.f32.xlu0 %v640
        %v657 = vpop.xlane.xlu0 %656
        %658 = vadd.xlane.f32.xlu0 %v641
        %v659 = vpop.xlane.xlu0 %658
        %660 = vadd.xlane.f32.xlu0 %v642
        %v661 = vpop.xlane.xlu0 %660
        %662 = vadd.xlane.f32.xlu0 %v643
        %v663 = vpop.xlane.xlu0 %662
        %664 = vadd.xlane.f32.xlu0 %v644
        %v665 = vpop.xlane.xlu0 %664
        %666 = vadd.xlane.f32.xlu0 %v645
        %v667 = vpop.xlane.xlu0 %666
        %668 = vadd.xlane.f32.xlu0 %v646
        %v669 = vpop.xlane.xlu0 %668
        %670 = vadd.xlane.f32.xlu0 %v647
        %v671 = vpop.xlane.xlu0 %670
        %672 = vadd.xlane.f32.xlu0 %v648
        %v673 = vpop.xlane.xlu0 %672
        %674 = vadd.xlane.f32.xlu0 %v649
        %v675 = vpop.xlane.xlu0 %674
        %676 = vadd.xlane.f32.xlu0 %v650
        %v677 = vpop.xlane.xlu0 %676
        %678 = vadd.xlane.f32.xlu0 %v651
        %v679 = vpop.xlane.xlu0 %678
        %680 = vadd.xlane.f32.xlu0 %v652
        %v681 = vpop.xlane.xlu0 %680
        %682 = vadd.xlane.f32.xlu0 %v653
        %v683 = vpop.xlane.xlu0 %682
        %684 = vadd.xlane.f32.xlu0 %v654
        %v685 = vpop.xlane.xlu0 %684
        %686 = vadd.xlane.f32.xlu0 %v655
        %v687 = vpop.xlane.xlu0 %686
        %v688 = vrcp.pop 128.0
        %v689 = vmul.f32 %v657, %v688
        %v690 = vmul.f32 %v659, %v688
        %v691 = vmul.f32 %v661, %v688
        %v692 = vmul.f32 %v663, %v688
        %v693 = vmul.f32 %v665, %v688
        %v694 = vmul.f32 %v667, %v688
        %v695 = vmul.f32 %v669, %v688
        %v696 = vmul.f32 %v671, %v688
        %v697 = vmul.f32 %v673, %v688
        %v698 = vmul.f32 %v675, %v688
        %v699 = vmul.f32 %v677, %v688
        %v700 = vmul.f32 %v679, %v688
        %v701 = vmul.f32 %v681, %v688
        %v702 = vmul.f32 %v683, %v688
        %v703 = vmul.f32 %v685, %v688
        %v704 = vmul.f32 %v687, %v688
        %v705 = vsub.f32 %v640, %v689
        %v706 = vsub.f32 %v641, %v690
        %v707 = vsub.f32 %v642, %v691
        %v708 = vsub.f32 %v643, %v692
        %v709 = vsub.f32 %v644, %v693
        %v710 = vsub.f32 %v645, %v694
        %v711 = vsub.f32 %v646, %v695
        %v712 = vsub.f32 %v647, %v696
        %v713 = vsub.f32 %v648, %v697
        %v714 = vsub.f32 %v649, %v698
        %v715 = vsub.f32 %v650, %v699
        %v716 = vsub.f32 %v651, %v700
        %v717 = vsub.f32 %v652, %v701
        %v718 = vsub.f32 %v653, %v702
        %v719 = vsub.f32 %v654, %v703
        %v720 = vsub.f32 %v655, %v704
        %v721 = vmul.f32 %v705, %v705
        %v722 = vmul.f32 %v706, %v706
        %v723 = vmul.f32 %v707, %v707
        %v724 = vmul.f32 %v708, %v708
        %v725 = vmul.f32 %v709, %v709
        %v726 = vmul.f32 %v710, %v710
        %v727 = vmul.f32 %v711, %v711
        %v728 = vmul.f32 %v712, %v712
        %v729 = vmul.f32 %v713, %v713
        %v730 = vmul.f32 %v714, %v714
        %v731 = vmul.f32 %v715, %v715
        %v732 = vmul.f32 %v716, %v716
        %v733 = vmul.f32 %v717, %v717
        %v734 = vmul.f32 %v718, %v718
        %v735 = vmul.f32 %v719, %v719
        %v736 = vmul.f32 %v720, %v720
        %737 = vadd.xlane.f32.xlu0 %v721
        %v738 = vpop.xlane.xlu0 %737
        %739 = vadd.xlane.f32.xlu0 %v722
        %v740 = vpop.xlane.xlu0 %739
        %741 = vadd.xlane.f32.xlu0 %v723
        %v742 = vpop.xlane.xlu0 %741
        %743 = vadd.xlane.f32.xlu0 %v724
        %v744 = vpop.xlane.xlu0 %743
        %745 = vadd.xlane.f32.xlu0 %v725
        %v746 = vpop.xlane.xlu0 %745
        %747 = vadd.xlane.f32.xlu0 %v726
        %v748 = vpop.xlane.xlu0 %747
        %749 = vadd.xlane.f32.xlu0 %v727
        %v750 = vpop.xlane.xlu0 %749
        %751 = vadd.xlane.f32.xlu0 %v728
        %v752 = vpop.xlane.xlu0 %751
        %753 = vadd.xlane.f32.xlu0 %v729
        %v754 = vpop.xlane.xlu0 %753
        %755 = vadd.xlane.f32.xlu0 %v730
        %v756 = vpop.xlane.xlu0 %755
        %757 = vadd.xlane.f32.xlu0 %v731
        %v758 = vpop.xlane.xlu0 %757
        %759 = vadd.xlane.f32.xlu0 %v732
        %v760 = vpop.xlane.xlu0 %759
        %761 = vadd.xlane.f32.xlu0 %v733
        %v762 = vpop.xlane.xlu0 %761
        %763 = vadd.xlane.f32.xlu0 %v734
        %v764 = vpop.xlane.xlu0 %763
        %765 = vadd.xlane.f32.xlu0 %v735
        %v766 = vpop.xlane.xlu0 %765
        %767 = vadd.xlane.f32.xlu0 %v736
        %v768 = vpop.xlane.xlu0 %767
        %v769 = vmul.f32 %v738, %v688
        %v770 = vmul.f32 %v740, %v688
        %v771 = vmul.f32 %v742, %v688
        %v772 = vmul.f32 %v744, %v688
        %v773 = vmul.f32 %v746, %v688
        %v774 = vmul.f32 %v748, %v688
        %v775 = vmul.f32 %v750, %v688
        %v776 = vmul.f32 %v752, %v688
        %v777 = vmul.f32 %v754, %v688
        %v778 = vmul.f32 %v756, %v688
        %v779 = vmul.f32 %v758, %v688
        %v780 = vmul.f32 %v760, %v688
        %v781 = vmul.f32 %v762, %v688
        %v782 = vmul.f32 %v764, %v688
        %v783 = vmul.f32 %v766, %v688
        %v784 = vmul.f32 %v768, %v688
        %v785 = vadd.f32 %v769, 1e-05
        %v786 = vadd.f32 %v770, 1e-05
        %v787 = vadd.f32 %v771, 1e-05
        %v788 = vadd.f32 %v772, 1e-05
        %v789 = vadd.f32 %v773, 1e-05
        %v790 = vadd.f32 %v774, 1e-05
        %v791 = vadd.f32 %v775, 1e-05
        %v792 = vadd.f32 %v776, 1e-05
        %v793 = vadd.f32 %v777, 1e-05
        %v794 = vadd.f32 %v778, 1e-05
        %v795 = vadd.f32 %v779, 1e-05
        %v796 = vadd.f32 %v780, 1e-05
        %v797 = vadd.f32 %v781, 1e-05
        %v798 = vadd.f32 %v782, 1e-05
        %v799 = vadd.f32 %v783, 1e-05
        %v800 = vadd.f32 %v784, 1e-05
        %v801 = vrsqrt.pop %v785
        %v802 = vrsqrt.pop %v786
        %v803 = vrsqrt.pop %v787
        %v804 = vrsqrt.pop %v788
        %v805 = vrsqrt.pop %v789
        %v806 = vrsqrt.pop %v790
        %v807 = vrsqrt.pop %v791
        %v808 = vrsqrt.pop %v792
        %v809 = vrsqrt.pop %v793
        %v810 = vrsqrt.pop %v794
        %v811 = vrsqrt.pop %v795
        %v812 = vrsqrt.pop %v796
        %v813 = vrsqrt.pop %v797
        %v814 = vrsqrt.pop %v798
        %v815 = vrsqrt.pop %v799
        %v816 = vrsqrt.pop %v800
        %v817 = vmul.f32 %v705, %v801
        %v818 = vmul.f32 %v706, %v802
        %v819 = vmul.f32 %v707, %v803
        %v820 = vmul.f32 %v708, %v804
        %v821 = vmul.f32 %v709, %v805
        %v822 = vmul.f32 %v710, %v806
        %v823 = vmul.f32 %v711, %v807
        %v824 = vmul.f32 %v712, %v808
        %v825 = vmul.f32 %v713, %v809
        %v826 = vmul.f32 %v714, %v810
        %v827 = vmul.f32 %v715, %v811
        %v828 = vmul.f32 %v716, %v812
        %v829 = vmul.f32 %v717, %v813
        %v830 = vmul.f32 %v718, %v814
        %v831 = vmul.f32 %v719, %v815
        %v832 = vmul.f32 %v720, %v816
        %s833 = smul.u32 %s47, 2
        %s834 = scalar_lea.vmem %s521, %s833 [#allocation12]
        %v835 = vld [vmem:[%s834] sm:$0x1]
        %v836 = vld [vmem:[%s834 + $0x1] sm:$0x1]
        %v837 = vadd.f32 %v835, 1.0
        %v838 = vadd.f32 %v836, 1.0
        %v841 = vlaneseq
        %v842 = vshrl.u32 %v841, 7
        %v843 = vsub.s32 0, %v842
        %v844 = vrot.slane %v837, %v843
        %v845 = vlaneseq
        %v846 = vshrl.u32 %v845, 7
        %v847 = vsub.s32 0, %v846
        %v848 = vrot.slane %v838, %v847
        %v851 = vmul.f32 %v817, %v844
        %v852 = vmul.f32 %v818, %v844
        %v853 = vmul.f32 %v819, %v844
        %v854 = vmul.f32 %v820, %v844
        %v855 = vmul.f32 %v821, %v844
        %v856 = vmul.f32 %v822, %v844
        %v857 = vmul.f32 %v823, %v844
        %v858 = vmul.f32 %v824, %v844
        %v859 = vmul.f32 %v825, %v848
        %v860 = vmul.f32 %v826, %v848
        %v861 = vmul.f32 %v827, %v848
        %v862 = vmul.f32 %v828, %v848
        %v863 = vmul.f32 %v829, %v848
        %v864 = vmul.f32 %v830, %v848
        %v865 = vmul.f32 %v831, %v848
        %v866 = vmul.f32 %v832, %v848
        %s867 = scalar_lea.vmem %s512, %s833 [#allocation11]
        %v868 = vld [vmem:[%s867] sm:$0x1]
        %v869 = vld [vmem:[%s867 + $0x1] sm:$0x1]
        %v872 = vlaneseq
        %v873 = vshrl.u32 %v872, 7
        %v874 = vsub.s32 0, %v873
        %v875 = vrot.slane %v868, %v874
        %v876 = vlaneseq
        %v877 = vshrl.u32 %v876, 7
        %v878 = vsub.s32 0, %v877
        %v879 = vrot.slane %v869, %v878
        %v882 = vadd.f32 %v851, %v875
        %v883 = vadd.f32 %v852, %v875
        %v884 = vadd.f32 %v853, %v875
        %v885 = vadd.f32 %v854, %v875
        %v886 = vadd.f32 %v855, %v875
        %v887 = vadd.f32 %v856, %v875
        %v888 = vadd.f32 %v857, %v875
        %v889 = vadd.f32 %v858, %v875
        %v890 = vadd.f32 %v859, %v879
        %v891 = vadd.f32 %v860, %v879
        %v892 = vadd.f32 %v861, %v879
        %v893 = vadd.f32 %v862, %v879
        %v894 = vadd.f32 %v863, %v879
        %v895 = vadd.f32 %v864, %v879
        %v896 = vadd.f32 %v865, %v879
        %v897 = vadd.f32 %v866, %v879
        %v898 = vpack.c.bf16 %v883, %v882
        %v899 = vpack.c.bf16 %v885, %v884
        %v900 = vpack.c.bf16 %v887, %v886
        %v901 = vpack.c.bf16 %v889, %v888
        %v902 = vpack.c.bf16 %v891, %v890
        %v903 = vpack.c.bf16 %v893, %v892
        %v904 = vpack.c.bf16 %v895, %v894
        %v905 = vpack.c.bf16 %v897, %v896
        %v906 = vld [vmem:[%s530] sm:$0xff]
        %v907 = vld [vmem:[%s530 + $0x8] sm:$0xff]
        %v908 = vld [vmem:[%s530 + $0x10] sm:$0xff]
        %v909 = vld [vmem:[%s530 + $0x18] sm:$0xff]
        %v910 = vld [vmem:[%s530 + $0x20] sm:$0xff]
        %v911 = vld [vmem:[%s530 + $0x28] sm:$0xff]
        %v912 = vld [vmem:[%s530 + $0x30] sm:$0xff]
        %v913 = vld [vmem:[%s530 + $0x38] sm:$0xff]
        %v914 = vld [vmem:[%s530 + $0x40] sm:$0xff]
        %v915 = vld [vmem:[%s530 + $0x48] sm:$0xff]
        %v916 = vld [vmem:[%s530 + $0x50] sm:$0xff]
        %v917 = vld [vmem:[%s530 + $0x58] sm:$0xff]
        %v918 = vld [vmem:[%s530 + $0x60] sm:$0xff]
        %v919 = vld [vmem:[%s530 + $0x68] sm:$0xff]
        %v920 = vld [vmem:[%s530 + $0x70] sm:$0xff]
        %v921 = vld [vmem:[%s530 + $0x78] sm:$0xff]
        %s922 = scalar_lea.vmem %s7, %s833
        %v923 = vld [vmem:[%s922] sm:$0x3]
        %v925 = vlaneseq
        %v926 = vshrl.u32 %v925, 7
        %v927 = vsub.s32 0, %v926
        %v928 = vrot.slane %v923, %v927
        %v929 = vlaneseq
        %v930 = vshrl.u32 %v929, 7
        %v931 = vsub.s32 1, %v930
        %v932 = vrot.slane %v923, %v931
        %v951 = vunpack.c.l.b16 %v906
        %v952 = vunpack.c.h.b16 %v906
        %v953 = vunpack.c.l.b16 %v907
        %v954 = vunpack.c.h.b16 %v907
        %v955 = vunpack.c.l.b16 %v908
        %v956 = vunpack.c.h.b16 %v908
        %v957 = vunpack.c.l.b16 %v909
        %v958 = vunpack.c.h.b16 %v909
        %v959 = vunpack.c.l.b16 %v910
        %v960 = vunpack.c.h.b16 %v910
        %v961 = vunpack.c.l.b16 %v911
        %v962 = vunpack.c.h.b16 %v911
        %v963 = vunpack.c.l.b16 %v912
        %v964 = vunpack.c.h.b16 %v912
        %v965 = vunpack.c.l.b16 %v913
        %v966 = vunpack.c.h.b16 %v913
        %v967 = vunpack.c.l.b16 %v914
        %v968 = vunpack.c.h.b16 %v914
        %v969 = vunpack.c.l.b16 %v915
        %v970 = vunpack.c.h.b16 %v915
        %v971 = vunpack.c.l.b16 %v916
        %v972 = vunpack.c.h.b16 %v916
        %v973 = vunpack.c.l.b16 %v917
        %v974 = vunpack.c.h.b16 %v917
        %v975 = vunpack.c.l.b16 %v918
        %v976 = vunpack.c.h.b16 %v918
        %v977 = vunpack.c.l.b16 %v919
        %v978 = vunpack.c.h.b16 %v919
        %v979 = vunpack.c.l.b16 %v920
        %v980 = vunpack.c.h.b16 %v920
        %v981 = vunpack.c.l.b16 %v921
        %v982 = vunpack.c.h.b16 %v921
        %v983 = vpack.c.b16 %v953, %v951
        %v984 = vpack.c.b16 %v954, %v952
        %v985 = vpack.c.b16 %v957, %v955
        %v986 = vpack.c.b16 %v958, %v956
        %v987 = vpack.c.b16 %v961, %v959
        %v988 = vpack.c.b16 %v962, %v960
        %v989 = vpack.c.b16 %v965, %v963
        %v990 = vpack.c.b16 %v966, %v964
        %v991 = vpack.c.b16 %v969, %v967
        %v992 = vpack.c.b16 %v970, %v968
        %v993 = vpack.c.b16 %v973, %v971
        %v994 = vpack.c.b16 %v974, %v972
        %v995 = vpack.c.b16 %v977, %v975
        %v996 = vpack.c.b16 %v978, %v976
        %v997 = vpack.c.b16 %v981, %v979
        %v998 = vpack.c.b16 %v982, %v980
        %1015 = vmatprep.subr.bf16.mxu0 %v998
        %1016 = vmatpush1.bf16.msra.mxu0 %v997
        %1017 = vmatprep.subr.bf16.mxu0 %v996
        %1018 = vmatpush1.bf16.msra.mxu0 %v995
        %1019 = vmatprep.subr.bf16.mxu0 %v994
        %1020 = vmatpush1.bf16.msra.mxu0 %v993
        %1021 = vmatprep.subr.bf16.mxu0 %v992
        %1022 = vmatpush1.bf16.msra.mxu0 %v991
        %1023 = vmatprep.subr.bf16.mxu0 %v990
        %1024 = vmatpush1.bf16.msra.mxu0 %v989
        %1025 = vmatprep.subr.bf16.mxu0 %v988
        %1026 = vmatpush1.bf16.msra.mxu0 %v987
        %1027 = vmatprep.subr.bf16.mxu0 %v986
        %1028 = vmatpush1.bf16.msra.mxu0 %v985
        %1029 = vmatprep.subr.bf16.mxu0 %v984
        %1030 = vmatpush1.bf16.msra.mxu0 %v983
        %1031 = vmatprep.subr.bf16.mxu0 0
        %1032 = vmatpush2.bf16.msra.mxu0 0
        %1033 = vmatprep.subr.bf16.mxu0 0
        %1034 = vmatpush2.bf16.msra.mxu0 0
        %1035 = vmatprep.subr.bf16.mxu0 0
        %1036 = vmatpush2.bf16.msra.mxu0 0
        %1037 = vmatprep.subr.bf16.mxu0 0
        %1038 = vmatpush2.bf16.msra.mxu0 0
        %1039 = vmatprep.subr.bf16.mxu0 0
        %1040 = vmatpush2.bf16.msra.mxu0 0
        %1041 = vmatprep.subr.bf16.mxu0 0
        %1042 = vmatpush2.bf16.msra.mxu0 0
        %1043 = vmatprep.subr.bf16.mxu0 0
        %1044 = vmatpush2.bf16.msra.mxu0 0
        %1045 = vmatprep.subr.bf16.mxu0 0
        %1046 = vmatpush2.bf16.msra.mxu0 0
        %1047 = vmatprep.mubr.bf16.mxu0 0
        %1048 = vmatmul.mubr.bf16.gmra.mxu0 %v898
        %v1049 = vpop.f32.mrf.mxu0
        %v1050 = vadd.f32 %v928, %v1049
        %v1051 = vpop.f32.mrf.mxu0
        %v1052 = vadd.f32 %v932, %v1051
        %v1053 = vpop.f32.mrf.mxu0
        %v1054 = vadd.f32 %v928, %v1053
        %v1055 = vpop.f32.mrf.mxu0
        %v1056 = vadd.f32 %v932, %v1055
        %1057 = vmatprep.mubr.bf16.mxu0 0
        %1058 = vmatmul.mubr.bf16.gmra.mxu0 %v899
        %v1059 = vpop.f32.mrf.mxu0
        %v1060 = vadd.f32 %v928, %v1059
        %v1061 = vpop.f32.mrf.mxu0
        %v1062 = vadd.f32 %v932, %v1061
        %v1063 = vpop.f32.mrf.mxu0
        %v1064 = vadd.f32 %v928, %v1063
        %v1065 = vpop.f32.mrf.mxu0
        %v1066 = vadd.f32 %v932, %v1065
        %1067 = vmatprep.mubr.bf16.mxu0 0
        %1068 = vmatmul.mubr.bf16.gmra.mxu0 %v900
        %v1069 = vpop.f32.mrf.mxu0
        %v1070 = vadd.f32 %v928, %v1069
        %v1071 = vpop.f32.mrf.mxu0
        %v1072 = vadd.f32 %v932, %v1071
        %v1073 = vpop.f32.mrf.mxu0
        %v1074 = vadd.f32 %v928, %v1073
        %v1075 = vpop.f32.mrf.mxu0
        %v1076 = vadd.f32 %v932, %v1075
        %1077 = vmatprep.mubr.bf16.mxu0 0
        %1078 = vmatmul.mubr.bf16.gmra.mxu0 %v901
        %v1079 = vpop.f32.mrf.mxu0
        %v1080 = vadd.f32 %v928, %v1079
        %v1081 = vpop.f32.mrf.mxu0
        %v1082 = vadd.f32 %v932, %v1081
        %v1083 = vpop.f32.mrf.mxu0
        %v1084 = vadd.f32 %v928, %v1083
        %v1085 = vpop.f32.mrf.mxu0
        %v1086 = vadd.f32 %v932, %v1085
        %1087 = vmatprep.mubr.bf16.mxu0 0
        %1088 = vmatmul.mubr.bf16.gmra.mxu0 %v902
        %v1089 = vpop.f32.mrf.mxu0
        %v1090 = vadd.f32 %v928, %v1089
        %v1091 = vpop.f32.mrf.mxu0
        %v1092 = vadd.f32 %v932, %v1091
        %v1093 = vpop.f32.mrf.mxu0
        %v1094 = vadd.f32 %v928, %v1093
        %v1095 = vpop.f32.mrf.mxu0
        %v1096 = vadd.f32 %v932, %v1095
        %1097 = vmatprep.mubr.bf16.mxu0 0
        %1098 = vmatmul.mubr.bf16.gmra.mxu0 %v903
        %v1099 = vpop.f32.mrf.mxu0
        %v1100 = vadd.f32 %v928, %v1099
        %v1101 = vpop.f32.mrf.mxu0
        %v1102 = vadd.f32 %v932, %v1101
        %v1103 = vpop.f32.mrf.mxu0
        %v1104 = vadd.f32 %v928, %v1103
        %v1105 = vpop.f32.mrf.mxu0
        %v1106 = vadd.f32 %v932, %v1105
        %1107 = vmatprep.mubr.bf16.mxu0 0
        %1108 = vmatmul.mubr.bf16.gmra.mxu0 %v904
        %v1109 = vpop.f32.mrf.mxu0
        %v1110 = vadd.f32 %v928, %v1109
        %v1111 = vpop.f32.mrf.mxu0
        %v1112 = vadd.f32 %v932, %v1111
        %v1113 = vpop.f32.mrf.mxu0
        %v1114 = vadd.f32 %v928, %v1113
        %v1115 = vpop.f32.mrf.mxu0
        %v1116 = vadd.f32 %v932, %v1115
        %1117 = vmatprep.mubr.bf16.mxu0 0
        %1118 = vmatmul.mubr.bf16.gmra.mxu0 %v905
        %v1119 = vpop.f32.mrf.mxu0
        %v1120 = vadd.f32 %v928, %v1119
        %v1121 = vpop.f32.mrf.mxu0
        %v1122 = vadd.f32 %v932, %v1121
        %v1123 = vpop.f32.mrf.mxu0
        %v1124 = vadd.f32 %v928, %v1123
        %v1125 = vpop.f32.mrf.mxu0
        %v1126 = vadd.f32 %v932, %v1125
        %1127 = vdwg.mxu0
        %v1128 = vmul.f32 %v1050, 0.5
        %v1129 = vmul.f32 %v1052, 0.5
        %v1130 = vmul.f32 %v1054, 0.5
        %v1131 = vmul.f32 %v1056, 0.5
        %v1132 = vmul.f32 %v1060, 0.5
        %v1133 = vmul.f32 %v1062, 0.5
        %v1134 = vmul.f32 %v1064, 0.5
        %v1135 = vmul.f32 %v1066, 0.5
        %v1136 = vmul.f32 %v1070, 0.5
        %v1137 = vmul.f32 %v1072, 0.5
        %v1138 = vmul.f32 %v1074, 0.5
        %v1139 = vmul.f32 %v1076, 0.5
        %v1140 = vmul.f32 %v1080, 0.5
        %v1141 = vmul.f32 %v1082, 0.5
        %v1142 = vmul.f32 %v1084, 0.5
        %v1143 = vmul.f32 %v1086, 0.5
        %v1144 = vmul.f32 %v1090, 0.5
        %v1145 = vmul.f32 %v1092, 0.5
        %v1146 = vmul.f32 %v1094, 0.5
        %v1147 = vmul.f32 %v1096, 0.5
        %v1148 = vmul.f32 %v1100, 0.5
        %v1149 = vmul.f32 %v1102, 0.5
        %v1150 = vmul.f32 %v1104, 0.5
        %v1151 = vmul.f32 %v1106, 0.5
        %v1152 = vmul.f32 %v1110, 0.5
        %v1153 = vmul.f32 %v1112, 0.5
        %v1154 = vmul.f32 %v1114, 0.5
        %v1155 = vmul.f32 %v1116, 0.5
        %v1156 = vmul.f32 %v1120, 0.5
        %v1157 = vmul.f32 %v1122, 0.5
        %v1158 = vmul.f32 %v1124, 0.5
        %v1159 = vmul.f32 %v1126, 0.5
        %v1160 = vmul.f32 %v1050, 0.70710677
        %v1161 = vmul.f32 %v1052, 0.70710677
        %v1162 = vmul.f32 %v1054, 0.70710677
        %v1163 = vmul.f32 %v1056, 0.70710677
        %v1164 = vmul.f32 %v1060, 0.70710677
        %v1165 = vmul.f32 %v1062, 0.70710677
        %v1166 = vmul.f32 %v1064, 0.70710677
        %v1167 = vmul.f32 %v1066, 0.70710677
        %v1168 = vmul.f32 %v1070, 0.70710677
        %v1169 = vmul.f32 %v1072, 0.70710677
        %v1170 = vmul.f32 %v1074, 0.70710677
        %v1171 = vmul.f32 %v1076, 0.70710677
        %v1172 = vmul.f32 %v1080, 0.70710677
        %v1173 = vmul.f32 %v1082, 0.70710677
        %v1174 = vmul.f32 %v1084, 0.70710677
        %v1175 = vmul.f32 %v1086, 0.70710677
        %v1176 = vmul.f32 %v1090, 0.70710677
        %v1177 = vmul.f32 %v1092, 0.70710677
        %v1178 = vmul.f32 %v1094, 0.70710677
        %v1179 = vmul.f32 %v1096, 0.70710677
        %v1180 = vmul.f32 %v1100, 0.70710677
        %v1181 = vmul.f32 %v1102, 0.70710677
        %v1182 = vmul.f32 %v1104, 0.70710677
        %v1183 = vmul.f32 %v1106, 0.70710677
        %v1184 = vmul.f32 %v1110, 0.70710677
        %v1185 = vmul.f32 %v1112, 0.70710677
        %v1186 = vmul.f32 %v1114, 0.70710677
        %v1187 = vmul.f32 %v1116, 0.70710677
        %v1188 = vmul.f32 %v1120, 0.70710677
        %v1189 = vmul.f32 %v1122, 0.70710677
        %v1190 = vmul.f32 %v1124, 0.70710677
        %v1191 = vmul.f32 %v1126, 0.70710677
        %v1192 = vand.u32 2147483647, %v1160
        %v1193 = vand.u32 2147483647, %v1161
        %v1194 = vand.u32 2147483647, %v1162
        %v1195 = vand.u32 2147483647, %v1163
        %v1196 = vand.u32 2147483647, %v1164
        %v1197 = vand.u32 2147483647, %v1165
        %v1198 = vand.u32 2147483647, %v1166
        %v1199 = vand.u32 2147483647, %v1167
        %v1200 = vand.u32 2147483647, %v1168
        %v1201 = vand.u32 2147483647, %v1169
        %v1202 = vand.u32 2147483647, %v1170
        %v1203 = vand.u32 2147483647, %v1171
        %v1204 = vand.u32 2147483647, %v1172
        %v1205 = vand.u32 2147483647, %v1173
        %v1206 = vand.u32 2147483647, %v1174
        %v1207 = vand.u32 2147483647, %v1175
        %v1208 = vand.u32 2147483647, %v1176
        %v1209 = vand.u32 2147483647, %v1177
        %v1210 = vand.u32 2147483647, %v1178
        %v1211 = vand.u32 2147483647, %v1179
        %v1212 = vand.u32 2147483647, %v1180
        %v1213 = vand.u32 2147483647, %v1181
        %v1214 = vand.u32 2147483647, %v1182
        %v1215 = vand.u32 2147483647, %v1183
        %v1216 = vand.u32 2147483647, %v1184
        %v1217 = vand.u32 2147483647, %v1185
        %v1218 = vand.u32 2147483647, %v1186
        %v1219 = vand.u32 2147483647, %v1187
        %v1220 = vand.u32 2147483647, %v1188
        %v1221 = vand.u32 2147483647, %v1189
        %v1222 = vand.u32 2147483647, %v1190
        %v1223 = vand.u32 2147483647, %v1191
        %v1224 = vmul.f32 %v1192, 0.3275911
        %v1225 = vmul.f32 %v1193, 0.3275911
        %v1226 = vmul.f32 %v1194, 0.3275911
        %v1227 = vmul.f32 %v1195, 0.3275911
        %v1228 = vmul.f32 %v1196, 0.3275911
        %v1229 = vmul.f32 %v1197, 0.3275911
        %v1230 = vmul.f32 %v1198, 0.3275911
        %v1231 = vmul.f32 %v1199, 0.3275911
        %v1232 = vmul.f32 %v1200, 0.3275911
        %v1233 = vmul.f32 %v1201, 0.3275911
        %v1234 = vmul.f32 %v1202, 0.3275911
        %v1235 = vmul.f32 %v1203, 0.3275911
        %v1236 = vmul.f32 %v1204, 0.3275911
        %v1237 = vmul.f32 %v1205, 0.3275911
        %v1238 = vmul.f32 %v1206, 0.3275911
        %v1239 = vmul.f32 %v1207, 0.3275911
        %v1240 = vmul.f32 %v1208, 0.3275911
        %v1241 = vmul.f32 %v1209, 0.3275911
        %v1242 = vmul.f32 %v1210, 0.3275911
        %v1243 = vmul.f32 %v1211, 0.3275911
        %v1244 = vmul.f32 %v1212, 0.3275911
        %v1245 = vmul.f32 %v1213, 0.3275911
        %v1246 = vmul.f32 %v1214, 0.3275911
        %v1247 = vmul.f32 %v1215, 0.3275911
        %v1248 = vmul.f32 %v1216, 0.3275911
        %v1249 = vmul.f32 %v1217, 0.3275911
        %v1250 = vmul.f32 %v1218, 0.3275911
        %v1251 = vmul.f32 %v1219, 0.3275911
        %v1252 = vmul.f32 %v1220, 0.3275911
        %v1253 = vmul.f32 %v1221, 0.3275911
        %v1254 = vmul.f32 %v1222, 0.3275911
        %v1255 = vmul.f32 %v1223, 0.3275911
        %v1256 = vadd.f32 %v1224, 1.0
        %v1257 = vadd.f32 %v1225, 1.0
        %v1258 = vadd.f32 %v1226, 1.0
        %v1259 = vadd.f32 %v1227, 1.0
        %v1260 = vadd.f32 %v1228, 1.0
        %v1261 = vadd.f32 %v1229, 1.0
        %v1262 = vadd.f32 %v1230, 1.0
        %v1263 = vadd.f32 %v1231, 1.0
        %v1264 = vadd.f32 %v1232, 1.0
        %v1265 = vadd.f32 %v1233, 1.0
        %v1266 = vadd.f32 %v1234, 1.0
        %v1267 = vadd.f32 %v1235, 1.0
        %v1268 = vadd.f32 %v1236, 1.0
        %v1269 = vadd.f32 %v1237, 1.0
        %v1270 = vadd.f32 %v1238, 1.0
        %v1271 = vadd.f32 %v1239, 1.0
        %v1272 = vadd.f32 %v1240, 1.0
        %v1273 = vadd.f32 %v1241, 1.0
        %v1274 = vadd.f32 %v1242, 1.0
        %v1275 = vadd.f32 %v1243, 1.0
        %v1276 = vadd.f32 %v1244, 1.0
        %v1277 = vadd.f32 %v1245, 1.0
        %v1278 = vadd.f32 %v1246, 1.0
        %v1279 = vadd.f32 %v1247, 1.0
        %v1280 = vadd.f32 %v1248, 1.0
        %v1281 = vadd.f32 %v1249, 1.0
        %v1282 = vadd.f32 %v1250, 1.0
        %v1283 = vadd.f32 %v1251, 1.0
        %v1284 = vadd.f32 %v1252, 1.0
        %v1285 = vadd.f32 %v1253, 1.0
        %v1286 = vadd.f32 %v1254, 1.0
        %v1287 = vadd.f32 %v1255, 1.0
        %v1288 = vrcp.pop %v1256
        %v1289 = vrcp.pop %v1257
        %v1290 = vrcp.pop %v1258
        %v1291 = vrcp.pop %v1259
        %v1292 = vrcp.pop %v1260
        %v1293 = vrcp.pop %v1261
        %v1294 = vrcp.pop %v1262
        %v1295 = vrcp.pop %v1263
        %v1296 = vrcp.pop %v1264
        %v1297 = vrcp.pop %v1265
        %v1298 = vrcp.pop %v1266
        %v1299 = vrcp.pop %v1267
        %v1300 = vrcp.pop %v1268
        %v1301 = vrcp.pop %v1269
        %v1302 = vrcp.pop %v1270
        %v1303 = vrcp.pop %v1271
        %v1304 = vrcp.pop %v1272
        %v1305 = vrcp.pop %v1273
        %v1306 = vrcp.pop %v1274
        %v1307 = vrcp.pop %v1275
        %v1308 = vrcp.pop %v1276
        %v1309 = vrcp.pop %v1277
        %v1310 = vrcp.pop %v1278
        %v1311 = vrcp.pop %v1279
        %v1312 = vrcp.pop %v1280
        %v1313 = vrcp.pop %v1281
        %v1314 = vrcp.pop %v1282
        %v1315 = vrcp.pop %v1283
        %v1316 = vrcp.pop %v1284
        %v1317 = vrcp.pop %v1285
        %v1318 = vrcp.pop %v1286
        %v1319 = vrcp.pop %v1287
        %v1320 = vmul.f32 %v1288, 1.0614054
        %v1321 = vmul.f32 %v1289, 1.0614054
        %v1322 = vmul.f32 %v1290, 1.0614054
        %v1323 = vmul.f32 %v1291, 1.0614054
        %v1324 = vmul.f32 %v1292, 1.0614054
        %v1325 = vmul.f32 %v1293, 1.0614054
        %v1326 = vmul.f32 %v1294, 1.0614054
        %v1327 = vmul.f32 %v1295, 1.0614054
        %v1328 = vmul.f32 %v1296, 1.0614054
        %v1329 = vmul.f32 %v1297, 1.0614054
        %v1330 = vmul.f32 %v1298, 1.0614054
        %v1331 = vmul.f32 %v1299, 1.0614054
        %v1332 = vmul.f32 %v1300, 1.0614054
        %v1333 = vmul.f32 %v1301, 1.0614054
        %v1334 = vmul.f32 %v1302, 1.0614054
        %v1335 = vmul.f32 %v1303, 1.0614054
        %v1336 = vmul.f32 %v1304, 1.0614054
        %v1337 = vmul.f32 %v1305, 1.0614054
        %v1338 = vmul.f32 %v1306, 1.0614054
        %v1339 = vmul.f32 %v1307, 1.0614054
        %v1340 = vmul.f32 %v1308, 1.0614054
        %v1341 = vmul.f32 %v1309, 1.0614054
        %v1342 = vmul.f32 %v1310, 1.0614054
        %v1343 = vmul.f32 %v1311, 1.0614054
        %v1344 = vmul.f32 %v1312, 1.0614054
        %v1345 = vmul.f32 %v1313, 1.0614054
        %v1346 = vmul.f32 %v1314, 1.0614054
        %v1347 = vmul.f32 %v1315, 1.0614054
        %v1348 = vmul.f32 %v1316, 1.0614054
        %v1349 = vmul.f32 %v1317, 1.0614054
        %v1350 = vmul.f32 %v1318, 1.0614054
        %v1351 = vmul.f32 %v1319, 1.0614054
        %v1352 = vadd.f32 %v1320, -1.4531521
        %v1353 = vadd.f32 %v1321, -1.4531521
        %v1354 = vadd.f32 %v1322, -1.4531521
        %v1355 = vadd.f32 %v1323, -1.4531521
        %v1356 = vadd.f32 %v1324, -1.4531521
        %v1357 = vadd.f32 %v1325, -1.4531521
        %v1358 = vadd.f32 %v1326, -1.4531521
        %v1359 = vadd.f32 %v1327, -1.4531521
        %v1360 = vadd.f32 %v1328, -1.4531521
        %v1361 = vadd.f32 %v1329, -1.4531521
        %v1362 = vadd.f32 %v1330, -1.4531521
        %v1363 = vadd.f32 %v1331, -1.4531521
        %v1364 = vadd.f32 %v1332, -1.4531521
        %v1365 = vadd.f32 %v1333, -1.4531521
        %v1366 = vadd.f32 %v1334, -1.4531521
        %v1367 = vadd.f32 %v1335, -1.4531521
        %v1368 = vadd.f32 %v1336, -1.4531521
        %v1369 = vadd.f32 %v1337, -1.4531521
        %v1370 = vadd.f32 %v1338, -1.4531521
        %v1371 = vadd.f32 %v1339, -1.4531521
        %v1372 = vadd.f32 %v1340, -1.4531521
        %v1373 = vadd.f32 %v1341, -1.4531521
        %v1374 = vadd.f32 %v1342, -1.4531521
        %v1375 = vadd.f32 %v1343, -1.4531521
        %v1376 = vadd.f32 %v1344, -1.4531521
        %v1377 = vadd.f32 %v1345, -1.4531521
        %v1378 = vadd.f32 %v1346, -1.4531521
        %v1379 = vadd.f32 %v1347, -1.4531521
        %v1380 = vadd.f32 %v1348, -1.4531521
        %v1381 = vadd.f32 %v1349, -1.4531521
        %v1382 = vadd.f32 %v1350, -1.4531521
        %v1383 = vadd.f32 %v1351, -1.4531521
        %v1384 = vmul.f32 %v1352, %v1288
        %v1385 = vmul.f32 %v1353, %v1289
        %v1386 = vmul.f32 %v1354, %v1290
        %v1387 = vmul.f32 %v1355, %v1291
        %v1388 = vmul.f32 %v1356, %v1292
        %v1389 = vmul.f32 %v1357, %v1293
        %v1390 = vmul.f32 %v1358, %v1294
        %v1391 = vmul.f32 %v1359, %v1295
        %v1392 = vmul.f32 %v1360, %v1296
        %v1393 = vmul.f32 %v1361, %v1297
        %v1394 = vmul.f32 %v1362, %v1298
        %v1395 = vmul.f32 %v1363, %v1299
        %v1396 = vmul.f32 %v1364, %v1300
        %v1397 = vmul.f32 %v1365, %v1301
        %v1398 = vmul.f32 %v1366, %v1302
        %v1399 = vmul.f32 %v1367, %v1303
        %v1400 = vmul.f32 %v1368, %v1304
        %v1401 = vmul.f32 %v1369, %v1305
        %v1402 = vmul.f32 %v1370, %v1306
        %v1403 = vmul.f32 %v1371, %v1307
        %v1404 = vmul.f32 %v1372, %v1308
        %v1405 = vmul.f32 %v1373, %v1309
        %v1406 = vmul.f32 %v1374, %v1310
        %v1407 = vmul.f32 %v1375, %v1311
        %v1408 = vmul.f32 %v1376, %v1312
        %v1409 = vmul.f32 %v1377, %v1313
        %v1410 = vmul.f32 %v1378, %v1314
        %v1411 = vmul.f32 %v1379, %v1315
        %v1412 = vmul.f32 %v1380, %v1316
        %v1413 = vmul.f32 %v1381, %v1317
        %v1414 = vmul.f32 %v1382, %v1318
        %v1415 = vmul.f32 %v1383, %v1319
        %v1416 = vadd.f32 %v1384, 1.4214138
        %v1417 = vadd.f32 %v1385, 1.4214138
        %v1418 = vadd.f32 %v1386, 1.4214138
        %v1419 = vadd.f32 %v1387, 1.4214138
        %v1420 = vadd.f32 %v1388, 1.4214138
        %v1421 = vadd.f32 %v1389, 1.4214138
        %v1422 = vadd.f32 %v1390, 1.4214138
        %v1423 = vadd.f32 %v1391, 1.4214138
        %v1424 = vadd.f32 %v1392, 1.4214138
        %v1425 = vadd.f32 %v1393, 1.4214138
        %v1426 = vadd.f32 %v1394, 1.4214138
        %v1427 = vadd.f32 %v1395, 1.4214138
        %v1428 = vadd.f32 %v1396, 1.4214138
        %v1429 = vadd.f32 %v1397, 1.4214138
        %v1430 = vadd.f32 %v1398, 1.4214138
        %v1431 = vadd.f32 %v1399, 1.4214138
        %v1432 = vadd.f32 %v1400, 1.4214138
        %v1433 = vadd.f32 %v1401, 1.4214138
        %v1434 = vadd.f32 %v1402, 1.4214138
        %v1435 = vadd.f32 %v1403, 1.4214138
        %v1436 = vadd.f32 %v1404, 1.4214138
        %v1437 = vadd.f32 %v1405, 1.4214138
        %v1438 = vadd.f32 %v1406, 1.4214138
        %v1439 = vadd.f32 %v1407, 1.4214138
        %v1440 = vadd.f32 %v1408, 1.4214138
        %v1441 = vadd.f32 %v1409, 1.4214138
        %v1442 = vadd.f32 %v1410, 1.4214138
        %v1443 = vadd.f32 %v1411, 1.4214138
        %v1444 = vadd.f32 %v1412, 1.4214138
        %v1445 = vadd.f32 %v1413, 1.4214138
        %v1446 = vadd.f32 %v1414, 1.4214138
        %v1447 = vadd.f32 %v1415, 1.4214138
        %v1448 = vmul.f32 %v1416, %v1288
        %v1449 = vmul.f32 %v1417, %v1289
        %v1450 = vmul.f32 %v1418, %v1290
        %v1451 = vmul.f32 %v1419, %v1291
        %v1452 = vmul.f32 %v1420, %v1292
        %v1453 = vmul.f32 %v1421, %v1293
        %v1454 = vmul.f32 %v1422, %v1294
        %v1455 = vmul.f32 %v1423, %v1295
        %v1456 = vmul.f32 %v1424, %v1296
        %v1457 = vmul.f32 %v1425, %v1297
        %v1458 = vmul.f32 %v1426, %v1298
        %v1459 = vmul.f32 %v1427, %v1299
        %v1460 = vmul.f32 %v1428, %v1300
        %v1461 = vmul.f32 %v1429, %v1301
        %v1462 = vmul.f32 %v1430, %v1302
        %v1463 = vmul.f32 %v1431, %v1303
        %v1464 = vmul.f32 %v1432, %v1304
        %v1465 = vmul.f32 %v1433, %v1305
        %v1466 = vmul.f32 %v1434, %v1306
        %v1467 = vmul.f32 %v1435, %v1307
        %v1468 = vmul.f32 %v1436, %v1308
        %v1469 = vmul.f32 %v1437, %v1309
        %v1470 = vmul.f32 %v1438, %v1310
        %v1471 = vmul.f32 %v1439, %v1311
        %v1472 = vmul.f32 %v1440, %v1312
        %v1473 = vmul.f32 %v1441, %v1313
        %v1474 = vmul.f32 %v1442, %v1314
        %v1475 = vmul.f32 %v1443, %v1315
        %v1476 = vmul.f32 %v1444, %v1316
        %v1477 = vmul.f32 %v1445, %v1317
        %v1478 = vmul.f32 %v1446, %v1318
        %v1479 = vmul.f32 %v1447, %v1319
        %v1480 = vadd.f32 %v1448, -0.28449672
        %v1481 = vadd.f32 %v1449, -0.28449672
        %v1482 = vadd.f32 %v1450, -0.28449672
        %v1483 = vadd.f32 %v1451, -0.28449672
        %v1484 = vadd.f32 %v1452, -0.28449672
        %v1485 = vadd.f32 %v1453, -0.28449672
        %v1486 = vadd.f32 %v1454, -0.28449672
        %v1487 = vadd.f32 %v1455, -0.28449672
        %v1488 = vadd.f32 %v1456, -0.28449672
        %v1489 = vadd.f32 %v1457, -0.28449672
        %v1490 = vadd.f32 %v1458, -0.28449672
        %v1491 = vadd.f32 %v1459, -0.28449672
        %v1492 = vadd.f32 %v1460, -0.28449672
        %v1493 = vadd.f32 %v1461, -0.28449672
        %v1494 = vadd.f32 %v1462, -0.28449672
        %v1495 = vadd.f32 %v1463, -0.28449672
        %v1496 = vadd.f32 %v1464, -0.28449672
        %v1497 = vadd.f32 %v1465, -0.28449672
        %v1498 = vadd.f32 %v1466, -0.28449672
        %v1499 = vadd.f32 %v1467, -0.28449672
        %v1500 = vadd.f32 %v1468, -0.28449672
        %v1501 = vadd.f32 %v1469, -0.28449672
        %v1502 = vadd.f32 %v1470, -0.28449672
        %v1503 = vadd.f32 %v1471, -0.28449672
        %v1504 = vadd.f32 %v1472, -0.28449672
        %v1505 = vadd.f32 %v1473, -0.28449672
        %v1506 = vadd.f32 %v1474, -0.28449672
        %v1507 = vadd.f32 %v1475, -0.28449672
        %v1508 = vadd.f32 %v1476, -0.28449672
        %v1509 = vadd.f32 %v1477, -0.28449672
        %v1510 = vadd.f32 %v1478, -0.28449672
        %v1511 = vadd.f32 %v1479, -0.28449672
        %v1512 = vmul.f32 %v1480, %v1288
        %v1513 = vmul.f32 %v1481, %v1289
        %v1514 = vmul.f32 %v1482, %v1290
        %v1515 = vmul.f32 %v1483, %v1291
        %v1516 = vmul.f32 %v1484, %v1292
        %v1517 = vmul.f32 %v1485, %v1293
        %v1518 = vmul.f32 %v1486, %v1294
        %v1519 = vmul.f32 %v1487, %v1295
        %v1520 = vmul.f32 %v1488, %v1296
        %v1521 = vmul.f32 %v1489, %v1297
        %v1522 = vmul.f32 %v1490, %v1298
        %v1523 = vmul.f32 %v1491, %v1299
        %v1524 = vmul.f32 %v1492, %v1300
        %v1525 = vmul.f32 %v1493, %v1301
        %v1526 = vmul.f32 %v1494, %v1302
        %v1527 = vmul.f32 %v1495, %v1303
        %v1528 = vmul.f32 %v1496, %v1304
        %v1529 = vmul.f32 %v1497, %v1305
        %v1530 = vmul.f32 %v1498, %v1306
        %v1531 = vmul.f32 %v1499, %v1307
        %v1532 = vmul.f32 %v1500, %v1308
        %v1533 = vmul.f32 %v1501, %v1309
        %v1534 = vmul.f32 %v1502, %v1310
        %v1535 = vmul.f32 %v1503, %v1311
        %v1536 = vmul.f32 %v1504, %v1312
        %v1537 = vmul.f32 %v1505, %v1313
        %v1538 = vmul.f32 %v1506, %v1314
        %v1539 = vmul.f32 %v1507, %v1315
        %v1540 = vmul.f32 %v1508, %v1316
        %v1541 = vmul.f32 %v1509, %v1317
        %v1542 = vmul.f32 %v1510, %v1318
        %v1543 = vmul.f32 %v1511, %v1319
        %v1544 = vadd.f32 %v1512, 0.2548296
        %v1545 = vadd.f32 %v1513, 0.2548296
        %v1546 = vadd.f32 %v1514, 0.2548296
        %v1547 = vadd.f32 %v1515, 0.2548296
        %v1548 = vadd.f32 %v1516, 0.2548296
        %v1549 = vadd.f32 %v1517, 0.2548296
        %v1550 = vadd.f32 %v1518, 0.2548296
        %v1551 = vadd.f32 %v1519, 0.2548296
        %v1552 = vadd.f32 %v1520, 0.2548296
        %v1553 = vadd.f32 %v1521, 0.2548296
        %v1554 = vadd.f32 %v1522, 0.2548296
        %v1555 = vadd.f32 %v1523, 0.2548296
        %v1556 = vadd.f32 %v1524, 0.2548296
        %v1557 = vadd.f32 %v1525, 0.2548296
        %v1558 = vadd.f32 %v1526, 0.2548296
        %v1559 = vadd.f32 %v1527, 0.2548296
        %v1560 = vadd.f32 %v1528, 0.2548296
        %v1561 = vadd.f32 %v1529, 0.2548296
        %v1562 = vadd.f32 %v1530, 0.2548296
        %v1563 = vadd.f32 %v1531, 0.2548296
        %v1564 = vadd.f32 %v1532, 0.2548296
        %v1565 = vadd.f32 %v1533, 0.2548296
        %v1566 = vadd.f32 %v1534, 0.2548296
        %v1567 = vadd.f32 %v1535, 0.2548296
        %v1568 = vadd.f32 %v1536, 0.2548296
        %v1569 = vadd.f32 %v1537, 0.2548296
        %v1570 = vadd.f32 %v1538, 0.2548296
        %v1571 = vadd.f32 %v1539, 0.2548296
        %v1572 = vadd.f32 %v1540, 0.2548296
        %v1573 = vadd.f32 %v1541, 0.2548296
        %v1574 = vadd.f32 %v1542, 0.2548296
        %v1575 = vadd.f32 %v1543, 0.2548296
        %v1576 = vmul.f32 %v1544, %v1288
        %v1577 = vmul.f32 %v1545, %v1289
        %v1578 = vmul.f32 %v1546, %v1290
        %v1579 = vmul.f32 %v1547, %v1291
        %v1580 = vmul.f32 %v1548, %v1292
        %v1581 = vmul.f32 %v1549, %v1293
        %v1582 = vmul.f32 %v1550, %v1294
        %v1583 = vmul.f32 %v1551, %v1295
        %v1584 = vmul.f32 %v1552, %v1296
        %v1585 = vmul.f32 %v1553, %v1297
        %v1586 = vmul.f32 %v1554, %v1298
        %v1587 = vmul.f32 %v1555, %v1299
        %v1588 = vmul.f32 %v1556, %v1300
        %v1589 = vmul.f32 %v1557, %v1301
        %v1590 = vmul.f32 %v1558, %v1302
        %v1591 = vmul.f32 %v1559, %v1303
        %v1592 = vmul.f32 %v1560, %v1304
        %v1593 = vmul.f32 %v1561, %v1305
        %v1594 = vmul.f32 %v1562, %v1306
        %v1595 = vmul.f32 %v1563, %v1307
        %v1596 = vmul.f32 %v1564, %v1308
        %v1597 = vmul.f32 %v1565, %v1309
        %v1598 = vmul.f32 %v1566, %v1310
        %v1599 = vmul.f32 %v1567, %v1311
        %v1600 = vmul.f32 %v1568, %v1312
        %v1601 = vmul.f32 %v1569, %v1313
        %v1602 = vmul.f32 %v1570, %v1314
        %v1603 = vmul.f32 %v1571, %v1315
        %v1604 = vmul.f32 %v1572, %v1316
        %v1605 = vmul.f32 %v1573, %v1317
        %v1606 = vmul.f32 %v1574, %v1318
        %v1607 = vmul.f32 %v1575, %v1319
        %v1608 = vsub.f32 0.0, %v1192
        %v1609 = vsub.f32 0.0, %v1193
        %v1610 = vsub.f32 0.0, %v1194
        %v1611 = vsub.f32 0.0, %v1195
        %v1612 = vsub.f32 0.0, %v1196
        %v1613 = vsub.f32 0.0, %v1197
        %v1614 = vsub.f32 0.0, %v1198
        %v1615 = vsub.f32 0.0, %v1199
        %v1616 = vsub.f32 0.0, %v1200
        %v1617 = vsub.f32 0.0, %v1201
        %v1618 = vsub.f32 0.0, %v1202
        %v1619 = vsub.f32 0.0, %v1203
        %v1620 = vsub.f32 0.0, %v1204
        %v1621 = vsub.f32 0.0, %v1205
        %v1622 = vsub.f32 0.0, %v1206
        %v1623 = vsub.f32 0.0, %v1207
        %v1624 = vsub.f32 0.0, %v1208
        %v1625 = vsub.f32 0.0, %v1209
        %v1626 = vsub.f32 0.0, %v1210
        %v1627 = vsub.f32 0.0, %v1211
        %v1628 = vsub.f32 0.0, %v1212
        %v1629 = vsub.f32 0.0, %v1213
        %v1630 = vsub.f32 0.0, %v1214
        %v1631 = vsub.f32 0.0, %v1215
        %v1632 = vsub.f32 0.0, %v1216
        %v1633 = vsub.f32 0.0, %v1217
        %v1634 = vsub.f32 0.0, %v1218
        %v1635 = vsub.f32 0.0, %v1219
        %v1636 = vsub.f32 0.0, %v1220
        %v1637 = vsub.f32 0.0, %v1221
        %v1638 = vsub.f32 0.0, %v1222
        %v1639 = vsub.f32 0.0, %v1223
        %v1640 = vmul.f32 %v1608, %v1192
        %v1641 = vmul.f32 %v1609, %v1193
        %v1642 = vmul.f32 %v1610, %v1194
        %v1643 = vmul.f32 %v1611, %v1195
        %v1644 = vmul.f32 %v1612, %v1196
        %v1645 = vmul.f32 %v1613, %v1197
        %v1646 = vmul.f32 %v1614, %v1198
        %v1647 = vmul.f32 %v1615, %v1199
        %v1648 = vmul.f32 %v1616, %v1200
        %v1649 = vmul.f32 %v1617, %v1201
        %v1650 = vmul.f32 %v1618, %v1202
        %v1651 = vmul.f32 %v1619, %v1203
        %v1652 = vmul.f32 %v1620, %v1204
        %v1653 = vmul.f32 %v1621, %v1205
        %v1654 = vmul.f32 %v1622, %v1206
        %v1655 = vmul.f32 %v1623, %v1207
        %v1656 = vmul.f32 %v1624, %v1208
        %v1657 = vmul.f32 %v1625, %v1209
        %v1658 = vmul.f32 %v1626, %v1210
        %v1659 = vmul.f32 %v1627, %v1211
        %v1660 = vmul.f32 %v1628, %v1212
        %v1661 = vmul.f32 %v1629, %v1213
        %v1662 = vmul.f32 %v1630, %v1214
        %v1663 = vmul.f32 %v1631, %v1215
        %v1664 = vmul.f32 %v1632, %v1216
        %v1665 = vmul.f32 %v1633, %v1217
        %v1666 = vmul.f32 %v1634, %v1218
        %v1667 = vmul.f32 %v1635, %v1219
        %v1668 = vmul.f32 %v1636, %v1220
        %v1669 = vmul.f32 %v1637, %v1221
        %v1670 = vmul.f32 %v1638, %v1222
        %v1671 = vmul.f32 %v1639, %v1223
        %v1672 = vmul.f32 %v1640, 1.442695
        %v1673 = vpow.pop %v1672
        %v1674 = vmul.f32 %v1641, 1.442695
        %v1675 = vpow.pop %v1674
        %v1676 = vmul.f32 %v1642, 1.442695
        %v1677 = vpow.pop %v1676
        %v1678 = vmul.f32 %v1643, 1.442695
        %v1679 = vpow.pop %v1678
        %v1680 = vmul.f32 %v1644, 1.442695
        %v1681 = vpow.pop %v1680
        %v1682 = vmul.f32 %v1645, 1.442695
        %v1683 = vpow.pop %v1682
        %v1684 = vmul.f32 %v1646, 1.442695
        %v1685 = vpow.pop %v1684
        %v1686 = vmul.f32 %v1647, 1.442695
        %v1687 = vpow.pop %v1686
        %v1688 = vmul.f32 %v1648, 1.442695
        %v1689 = vpow.pop %v1688
        %v1690 = vmul.f32 %v1649, 1.442695
        %v1691 = vpow.pop %v1690
        %v1692 = vmul.f32 %v1650, 1.442695
        %v1693 = vpow.pop %v1692
        %v1694 = vmul.f32 %v1651, 1.442695
        %v1695 = vpow.pop %v1694
        %v1696 = vmul.f32 %v1652, 1.442695
        %v1697 = vpow.pop %v1696
        %v1698 = vmul.f32 %v1653, 1.442695
        %v1699 = vpow.pop %v1698
        %v1700 = vmul.f32 %v1654, 1.442695
        %v1701 = vpow.pop %v1700
        %v1702 = vmul.f32 %v1655, 1.442695
        %v1703 = vpow.pop %v1702
        %v1704 = vmul.f32 %v1656, 1.442695
        %v1705 = vpow.pop %v1704
        %v1706 = vmul.f32 %v1657, 1.442695
        %v1707 = vpow.pop %v1706
        %v1708 = vmul.f32 %v1658, 1.442695
        %v1709 = vpow.pop %v1708
        %v1710 = vmul.f32 %v1659, 1.442695
        %v1711 = vpow.pop %v1710
        %v1712 = vmul.f32 %v1660, 1.442695
        %v1713 = vpow.pop %v1712
        %v1714 = vmul.f32 %v1661, 1.442695
        %v1715 = vpow.pop %v1714
        %v1716 = vmul.f32 %v1662, 1.442695
        %v1717 = vpow.pop %v1716
        %v1718 = vmul.f32 %v1663, 1.442695
        %v1719 = vpow.pop %v1718
        %v1720 = vmul.f32 %v1664, 1.442695
        %v1721 = vpow.pop %v1720
        %v1722 = vmul.f32 %v1665, 1.442695
        %v1723 = vpow.pop %v1722
        %v1724 = vmul.f32 %v1666, 1.442695
        %v1725 = vpow.pop %v1724
        %v1726 = vmul.f32 %v1667, 1.442695
        %v1727 = vpow.pop %v1726
        %v1728 = vmul.f32 %v1668, 1.442695
        %v1729 = vpow.pop %v1728
        %v1730 = vmul.f32 %v1669, 1.442695
        %v1731 = vpow.pop %v1730
        %v1732 = vmul.f32 %v1670, 1.442695
        %v1733 = vpow.pop %v1732
        %v1734 = vmul.f32 %v1671, 1.442695
        %v1735 = vpow.pop %v1734
        %v1736 = vmul.f32 %v1576, %v1673
        %v1737 = vmul.f32 %v1577, %v1675
        %v1738 = vmul.f32 %v1578, %v1677
        %v1739 = vmul.f32 %v1579, %v1679
        %v1740 = vmul.f32 %v1580, %v1681
        %v1741 = vmul.f32 %v1581, %v1683
        %v1742 = vmul.f32 %v1582, %v1685
        %v1743 = vmul.f32 %v1583, %v1687
        %v1744 = vmul.f32 %v1584, %v1689
        %v1745 = vmul.f32 %v1585, %v1691
        %v1746 = vmul.f32 %v1586, %v1693
        %v1747 = vmul.f32 %v1587, %v1695
        %v1748 = vmul.f32 %v1588, %v1697
        %v1749 = vmul.f32 %v1589, %v1699
        %v1750 = vmul.f32 %v1590, %v1701
        %v1751 = vmul.f32 %v1591, %v1703
        %v1752 = vmul.f32 %v1592, %v1705
        %v1753 = vmul.f32 %v1593, %v1707
        %v1754 = vmul.f32 %v1594, %v1709
        %v1755 = vmul.f32 %v1595, %v1711
        %v1756 = vmul.f32 %v1596, %v1713
        %v1757 = vmul.f32 %v1597, %v1715
        %v1758 = vmul.f32 %v1598, %v1717
        %v1759 = vmul.f32 %v1599, %v1719
        %v1760 = vmul.f32 %v1600, %v1721
        %v1761 = vmul.f32 %v1601, %v1723
        %v1762 = vmul.f32 %v1602, %v1725
        %v1763 = vmul.f32 %v1603, %v1727
        %v1764 = vmul.f32 %v1604, %v1729
        %v1765 = vmul.f32 %v1605, %v1731
        %v1766 = vmul.f32 %v1606, %v1733
        %v1767 = vmul.f32 %v1607, %v1735
        %v1768 = vsub.f32 1.0, %v1736
        %v1769 = vsub.f32 1.0, %v1737
        %v1770 = vsub.f32 1.0, %v1738
        %v1771 = vsub.f32 1.0, %v1739
        %v1772 = vsub.f32 1.0, %v1740
        %v1773 = vsub.f32 1.0, %v1741
        %v1774 = vsub.f32 1.0, %v1742
        %v1775 = vsub.f32 1.0, %v1743
        %v1776 = vsub.f32 1.0, %v1744
        %v1777 = vsub.f32 1.0, %v1745
        %v1778 = vsub.f32 1.0, %v1746
        %v1779 = vsub.f32 1.0, %v1747
        %v1780 = vsub.f32 1.0, %v1748
        %v1781 = vsub.f32 1.0, %v1749
        %v1782 = vsub.f32 1.0, %v1750
        %v1783 = vsub.f32 1.0, %v1751
        %v1784 = vsub.f32 1.0, %v1752
        %v1785 = vsub.f32 1.0, %v1753
        %v1786 = vsub.f32 1.0, %v1754
        %v1787 = vsub.f32 1.0, %v1755
        %v1788 = vsub.f32 1.0, %v1756
        %v1789 = vsub.f32 1.0, %v1757
        %v1790 = vsub.f32 1.0, %v1758
        %v1791 = vsub.f32 1.0, %v1759
        %v1792 = vsub.f32 1.0, %v1760
        %v1793 = vsub.f32 1.0, %v1761
        %v1794 = vsub.f32 1.0, %v1762
        %v1795 = vsub.f32 1.0, %v1763
        %v1796 = vsub.f32 1.0, %v1764
        %v1797 = vsub.f32 1.0, %v1765
        %v1798 = vsub.f32 1.0, %v1766
        %v1799 = vsub.f32 1.0, %v1767
        %vm1800 = vcmp.ge.f32.partialorder %v1160, 0.0
        %vm1801 = vcmp.ge.f32.partialorder %v1161, 0.0
        %vm1802 = vcmp.ge.f32.partialorder %v1162, 0.0
        %vm1803 = vcmp.ge.f32.partialorder %v1163, 0.0
        %vm1804 = vcmp.ge.f32.partialorder %v1164, 0.0
        %vm1805 = vcmp.ge.f32.partialorder %v1165, 0.0
        %vm1806 = vcmp.ge.f32.partialorder %v1166, 0.0
        %vm1807 = vcmp.ge.f32.partialorder %v1167, 0.0
        %vm1808 = vcmp.ge.f32.partialorder %v1168, 0.0
        %vm1809 = vcmp.ge.f32.partialorder %v1169, 0.0
        %vm1810 = vcmp.ge.f32.partialorder %v1170, 0.0
        %vm1811 = vcmp.ge.f32.partialorder %v1171, 0.0
        %vm1812 = vcmp.ge.f32.partialorder %v1172, 0.0
        %vm1813 = vcmp.ge.f32.partialorder %v1173, 0.0
        %vm1814 = vcmp.ge.f32.partialorder %v1174, 0.0
        %vm1815 = vcmp.ge.f32.partialorder %v1175, 0.0
        %vm1816 = vcmp.ge.f32.partialorder %v1176, 0.0
        %vm1817 = vcmp.ge.f32.partialorder %v1177, 0.0
        %vm1818 = vcmp.ge.f32.partialorder %v1178, 0.0
        %vm1819 = vcmp.ge.f32.partialorder %v1179, 0.0
        %vm1820 = vcmp.ge.f32.partialorder %v1180, 0.0
        %vm1821 = vcmp.ge.f32.partialorder %v1181, 0.0
        %vm1822 = vcmp.ge.f32.partialorder %v1182, 0.0
        %vm1823 = vcmp.ge.f32.partialorder %v1183, 0.0
        %vm1824 = vcmp.ge.f32.partialorder %v1184, 0.0
        %vm1825 = vcmp.ge.f32.partialorder %v1185, 0.0
        %vm1826 = vcmp.ge.f32.partialorder %v1186, 0.0
        %vm1827 = vcmp.ge.f32.partialorder %v1187, 0.0
        %vm1828 = vcmp.ge.f32.partialorder %v1188, 0.0
        %vm1829 = vcmp.ge.f32.partialorder %v1189, 0.0
        %vm1830 = vcmp.ge.f32.partialorder %v1190, 0.0
        %vm1831 = vcmp.ge.f32.partialorder %v1191, 0.0
        %v1832 = vsub.f32 0.0, %v1768
        %v1833 = vsub.f32 0.0, %v1769
        %v1834 = vsub.f32 0.0, %v1770
        %v1835 = vsub.f32 0.0, %v1771
        %v1836 = vsub.f32 0.0, %v1772
        %v1837 = vsub.f32 0.0, %v1773
        %v1838 = vsub.f32 0.0, %v1774
        %v1839 = vsub.f32 0.0, %v1775
        %v1840 = vsub.f32 0.0, %v1776
        %v1841 = vsub.f32 0.0, %v1777
        %v1842 = vsub.f32 0.0, %v1778
        %v1843 = vsub.f32 0.0, %v1779
        %v1844 = vsub.f32 0.0, %v1780
        %v1845 = vsub.f32 0.0, %v1781
        %v1846 = vsub.f32 0.0, %v1782
        %v1847 = vsub.f32 0.0, %v1783
        %v1848 = vsub.f32 0.0, %v1784
        %v1849 = vsub.f32 0.0, %v1785
        %v1850 = vsub.f32 0.0, %v1786
        %v1851 = vsub.f32 0.0, %v1787
        %v1852 = vsub.f32 0.0, %v1788
        %v1853 = vsub.f32 0.0, %v1789
        %v1854 = vsub.f32 0.0, %v1790
        %v1855 = vsub.f32 0.0, %v1791
        %v1856 = vsub.f32 0.0, %v1792
        %v1857 = vsub.f32 0.0, %v1793
        %v1858 = vsub.f32 0.0, %v1794
        %v1859 = vsub.f32 0.0, %v1795
        %v1860 = vsub.f32 0.0, %v1796
        %v1861 = vsub.f32 0.0, %v1797
        %v1862 = vsub.f32 0.0, %v1798
        %v1863 = vsub.f32 0.0, %v1799
        %v1864 = vsel %vm1800, %v1768, %v1832
        %v1865 = vsel %vm1801, %v1769, %v1833
        %v1866 = vsel %vm1802, %v1770, %v1834
        %v1867 = vsel %vm1803, %v1771, %v1835
        %v1868 = vsel %vm1804, %v1772, %v1836
        %v1869 = vsel %vm1805, %v1773, %v1837
        %v1870 = vsel %vm1806, %v1774, %v1838
        %v1871 = vsel %vm1807, %v1775, %v1839
        %v1872 = vsel %vm1808, %v1776, %v1840
        %v1873 = vsel %vm1809, %v1777, %v1841
        %v1874 = vsel %vm1810, %v1778, %v1842
        %v1875 = vsel %vm1811, %v1779, %v1843
        %v1876 = vsel %vm1812, %v1780, %v1844
        %v1877 = vsel %vm1813, %v1781, %v1845
        %v1878 = vsel %vm1814, %v1782, %v1846
        %v1879 = vsel %vm1815, %v1783, %v1847
        %v1880 = vsel %vm1816, %v1784, %v1848
        %v1881 = vsel %vm1817, %v1785, %v1849
        %v1882 = vsel %vm1818, %v1786, %v1850
        %v1883 = vsel %vm1819, %v1787, %v1851
        %v1884 = vsel %vm1820, %v1788, %v1852
        %v1885 = vsel %vm1821, %v1789, %v1853
        %v1886 = vsel %vm1822, %v1790, %v1854
        %v1887 = vsel %vm1823, %v1791, %v1855
        %v1888 = vsel %vm1824, %v1792, %v1856
        %v1889 = vsel %vm1825, %v1793, %v1857
        %v1890 = vsel %vm1826, %v1794, %v1858
        %v1891 = vsel %vm1827, %v1795, %v1859
        %v1892 = vsel %vm1828, %v1796, %v1860
        %v1893 = vsel %vm1829, %v1797, %v1861
        %v1894 = vsel %vm1830, %v1798, %v1862
        %v1895 = vsel %vm1831, %v1799, %v1863
        %v1896 = vadd.f32 %v1864, 1.0
        %v1897 = vadd.f32 %v1865, 1.0
        %v1898 = vadd.f32 %v1866, 1.0
        %v1899 = vadd.f32 %v1867, 1.0
        %v1900 = vadd.f32 %v1868, 1.0
        %v1901 = vadd.f32 %v1869, 1.0
        %v1902 = vadd.f32 %v1870, 1.0
        %v1903 = vadd.f32 %v1871, 1.0
        %v1904 = vadd.f32 %v1872, 1.0
        %v1905 = vadd.f32 %v1873, 1.0
        %v1906 = vadd.f32 %v1874, 1.0
        %v1907 = vadd.f32 %v1875, 1.0
        %v1908 = vadd.f32 %v1876, 1.0
        %v1909 = vadd.f32 %v1877, 1.0
        %v1910 = vadd.f32 %v1878, 1.0
        %v1911 = vadd.f32 %v1879, 1.0
        %v1912 = vadd.f32 %v1880, 1.0
        %v1913 = vadd.f32 %v1881, 1.0
        %v1914 = vadd.f32 %v1882, 1.0
        %v1915 = vadd.f32 %v1883, 1.0
        %v1916 = vadd.f32 %v1884, 1.0
        %v1917 = vadd.f32 %v1885, 1.0
        %v1918 = vadd.f32 %v1886, 1.0
        %v1919 = vadd.f32 %v1887, 1.0
        %v1920 = vadd.f32 %v1888, 1.0
        %v1921 = vadd.f32 %v1889, 1.0
        %v1922 = vadd.f32 %v1890, 1.0
        %v1923 = vadd.f32 %v1891, 1.0
        %v1924 = vadd.f32 %v1892, 1.0
        %v1925 = vadd.f32 %v1893, 1.0
        %v1926 = vadd.f32 %v1894, 1.0
        %v1927 = vadd.f32 %v1895, 1.0
        %v1928 = vmul.f32 %v1128, %v1896
        %v1929 = vmul.f32 %v1129, %v1897
        %v1930 = vmul.f32 %v1130, %v1898
        %v1931 = vmul.f32 %v1131, %v1899
        %v1932 = vmul.f32 %v1132, %v1900
        %v1933 = vmul.f32 %v1133, %v1901
        %v1934 = vmul.f32 %v1134, %v1902
        %v1935 = vmul.f32 %v1135, %v1903
        %v1936 = vmul.f32 %v1136, %v1904
        %v1937 = vmul.f32 %v1137, %v1905
        %v1938 = vmul.f32 %v1138, %v1906
        %v1939 = vmul.f32 %v1139, %v1907
        %v1940 = vmul.f32 %v1140, %v1908
        %v1941 = vmul.f32 %v1141, %v1909
        %v1942 = vmul.f32 %v1142, %v1910
        %v1943 = vmul.f32 %v1143, %v1911
        %v1944 = vmul.f32 %v1144, %v1912
        %v1945 = vmul.f32 %v1145, %v1913
        %v1946 = vmul.f32 %v1146, %v1914
        %v1947 = vmul.f32 %v1147, %v1915
        %v1948 = vmul.f32 %v1148, %v1916
        %v1949 = vmul.f32 %v1149, %v1917
        %v1950 = vmul.f32 %v1150, %v1918
        %v1951 = vmul.f32 %v1151, %v1919
        %v1952 = vmul.f32 %v1152, %v1920
        %v1953 = vmul.f32 %v1153, %v1921
        %v1954 = vmul.f32 %v1154, %v1922
        %v1955 = vmul.f32 %v1155, %v1923
        %v1956 = vmul.f32 %v1156, %v1924
        %v1957 = vmul.f32 %v1157, %v1925
        %v1958 = vmul.f32 %v1158, %v1926
        %v1959 = vmul.f32 %v1159, %v1927
        %v1960 = vpack.c.bf16 %v1930, %v1928
        %v1961 = vpack.c.bf16 %v1931, %v1929
        %v1962 = vpack.c.bf16 %v1934, %v1932
        %v1963 = vpack.c.bf16 %v1935, %v1933
        %v1964 = vpack.c.bf16 %v1938, %v1936
        %v1965 = vpack.c.bf16 %v1939, %v1937
        %v1966 = vpack.c.bf16 %v1942, %v1940
        %v1967 = vpack.c.bf16 %v1943, %v1941
        %v1968 = vpack.c.bf16 %v1946, %v1944
        %v1969 = vpack.c.bf16 %v1947, %v1945
        %v1970 = vpack.c.bf16 %v1950, %v1948
        %v1971 = vpack.c.bf16 %v1951, %v1949
        %v1972 = vpack.c.bf16 %v1954, %v1952
        %v1973 = vpack.c.bf16 %v1955, %v1953
        %v1974 = vpack.c.bf16 %v1958, %v1956
        %v1975 = vpack.c.bf16 %v1959, %v1957
        %v1976 = vld [vmem:[%s539] sm:$0xf]
        %v1977 = vld [vmem:[%s539 + $0x4] sm:$0xf]
        %v1978 = vld [vmem:[%s539 + $0x8] sm:$0xf]
        %v1979 = vld [vmem:[%s539 + $0xc] sm:$0xf]
        %v1980 = vld [vmem:[%s539 + $0x10] sm:$0xf]
        %v1981 = vld [vmem:[%s539 + $0x14] sm:$0xf]
        %v1982 = vld [vmem:[%s539 + $0x18] sm:$0xf]
        %v1983 = vld [vmem:[%s539 + $0x1c] sm:$0xf]
        %v1984 = vld [vmem:[%s539 + $0x20] sm:$0xf]
        %v1985 = vld [vmem:[%s539 + $0x24] sm:$0xf]
        %v1986 = vld [vmem:[%s539 + $0x28] sm:$0xf]
        %v1987 = vld [vmem:[%s539 + $0x2c] sm:$0xf]
        %v1988 = vld [vmem:[%s539 + $0x30] sm:$0xf]
        %v1989 = vld [vmem:[%s539 + $0x34] sm:$0xf]
        %v1990 = vld [vmem:[%s539 + $0x38] sm:$0xf]
        %v1991 = vld [vmem:[%s539 + $0x3c] sm:$0xf]
        %v1992 = vld [vmem:[%s539 + $0x40] sm:$0xf]
        %v1993 = vld [vmem:[%s539 + $0x44] sm:$0xf]
        %v1994 = vld [vmem:[%s539 + $0x48] sm:$0xf]
        %v1995 = vld [vmem:[%s539 + $0x4c] sm:$0xf]
        %v1996 = vld [vmem:[%s539 + $0x50] sm:$0xf]
        %v1997 = vld [vmem:[%s539 + $0x54] sm:$0xf]
        %v1998 = vld [vmem:[%s539 + $0x58] sm:$0xf]
        %v1999 = vld [vmem:[%s539 + $0x5c] sm:$0xf]
        %v2000 = vld [vmem:[%s539 + $0x60] sm:$0xf]
        %v2001 = vld [vmem:[%s539 + $0x64] sm:$0xf]
        %v2002 = vld [vmem:[%s539 + $0x68] sm:$0xf]
        %v2003 = vld [vmem:[%s539 + $0x6c] sm:$0xf]
        %v2004 = vld [vmem:[%s539 + $0x70] sm:$0xf]
        %v2005 = vld [vmem:[%s539 + $0x74] sm:$0xf]
        %v2006 = vld [vmem:[%s539 + $0x78] sm:$0xf]
        %v2007 = vld [vmem:[%s539 + $0x7c] sm:$0xf]
        %s2008 = scalar_lea.vmem %s9, %s47
        %v2009 = vld [vmem:[%s2008] sm:$0x1]
        %v2011 = vlaneseq
        %v2012 = vshrl.u32 %v2011, 7
        %v2013 = vsub.s32 0, %v2012
        %v2014 = vrot.slane %v2009, %v2013
        %v2048 = vunpack.c.l.b16 %v1976
        %v2049 = vunpack.c.l.b16 %v1977
        %v2050 = vunpack.c.l.b16 %v1978
        %v2051 = vunpack.c.l.b16 %v1979
        %v2052 = vunpack.c.l.b16 %v1980
        %v2053 = vunpack.c.l.b16 %v1981
        %v2054 = vunpack.c.l.b16 %v1982
        %v2055 = vunpack.c.l.b16 %v1983
        %v2056 = vunpack.c.l.b16 %v1984
        %v2057 = vunpack.c.l.b16 %v1985
        %v2058 = vunpack.c.l.b16 %v1986
        %v2059 = vunpack.c.l.b16 %v1987
        %v2060 = vunpack.c.l.b16 %v1988
        %v2061 = vunpack.c.l.b16 %v1989
        %v2062 = vunpack.c.l.b16 %v1990
        %v2063 = vunpack.c.l.b16 %v1991
        %v2064 = vunpack.c.l.b16 %v1992
        %v2065 = vunpack.c.l.b16 %v1993
        %v2066 = vunpack.c.l.b16 %v1994
        %v2067 = vunpack.c.l.b16 %v1995
        %v2068 = vunpack.c.l.b16 %v1996
        %v2069 = vunpack.c.l.b16 %v1997
        %v2070 = vunpack.c.l.b16 %v1998
        %v2071 = vunpack.c.l.b16 %v1999
        %v2072 = vunpack.c.l.b16 %v2000
        %v2073 = vunpack.c.l.b16 %v2001
        %v2074 = vunpack.c.l.b16 %v2002
        %v2075 = vunpack.c.l.b16 %v2003
        %v2076 = vunpack.c.l.b16 %v2004
        %v2077 = vunpack.c.l.b16 %v2005
        %v2078 = vunpack.c.l.b16 %v2006
        %v2079 = vunpack.c.l.b16 %v2007
        %v2080 = vpack.c.b16 %v2049, %v2048
        %v2081 = vpack.c.b16 %v2051, %v2050
        %v2082 = vpack.c.b16 %v2053, %v2052
        %v2083 = vpack.c.b16 %v2055, %v2054
        %v2084 = vpack.c.b16 %v2057, %v2056
        %v2085 = vpack.c.b16 %v2059, %v2058
        %v2086 = vpack.c.b16 %v2061, %v2060
        %v2087 = vpack.c.b16 %v2063, %v2062
        %v2088 = vpack.c.b16 %v2065, %v2064
        %v2089 = vpack.c.b16 %v2067, %v2066
        %v2090 = vpack.c.b16 %v2069, %v2068
        %v2091 = vpack.c.b16 %v2071, %v2070
        %v2092 = vpack.c.b16 %v2073, %v2072
        %v2093 = vpack.c.b16 %v2075, %v2074
        %v2094 = vpack.c.b16 %v2077, %v2076
        %v2095 = vpack.c.b16 %v2079, %v2078
        %2112 = vmatprep.subr.bf16.mxu0 0
        %2113 = vmatpush1.bf16.msra.mxu0 %v2087
        %2114 = vmatprep.subr.bf16.mxu0 0
        %2115 = vmatpush1.bf16.msra.mxu0 %v2086
        %2116 = vmatprep.subr.bf16.mxu0 0
        %2117 = vmatpush1.bf16.msra.mxu0 %v2085
        %2118 = vmatprep.subr.bf16.mxu0 0
        %2119 = vmatpush1.bf16.msra.mxu0 %v2084
        %2120 = vmatprep.subr.bf16.mxu0 0
        %2121 = vmatpush1.bf16.msra.mxu0 %v2083
        %2122 = vmatprep.subr.bf16.mxu0 0
        %2123 = vmatpush1.bf16.msra.mxu0 %v2082
        %2124 = vmatprep.subr.bf16.mxu0 0
        %2125 = vmatpush1.bf16.msra.mxu0 %v2081
        %2126 = vmatprep.subr.bf16.mxu0 0
        %2127 = vmatpush1.bf16.msra.mxu0 %v2080
        %2128 = vmatprep.subr.bf16.mxu0 0
        %2129 = vmatpush2.bf16.msra.mxu0 %v2095
        %2130 = vmatprep.subr.bf16.mxu0 0
        %2131 = vmatpush2.bf16.msra.mxu0 %v2094
        %2132 = vmatprep.subr.bf16.mxu0 0
        %2133 = vmatpush2.bf16.msra.mxu0 %v2093
        %2134 = vmatprep.subr.bf16.mxu0 0
        %2135 = vmatpush2.bf16.msra.mxu0 %v2092
        %2136 = vmatprep.subr.bf16.mxu0 0
        %2137 = vmatpush2.bf16.msra.mxu0 %v2091
        %2138 = vmatprep.subr.bf16.mxu0 0
        %2139 = vmatpush2.bf16.msra.mxu0 %v2090
        %2140 = vmatprep.subr.bf16.mxu0 0
        %2141 = vmatpush2.bf16.msra.mxu0 %v2089
        %2142 = vmatprep.subr.bf16.mxu0 0
        %2143 = vmatpush2.bf16.msra.mxu0 %v2088
        %2144 = vmatprep.mubr.bf16.mxu0 %v1961
        %2145 = vmatmul.mubr.bf16.gmra.mxu0 %v1960
        %v2146 = vpop.f32.mrf.mxu0
        %v2147 = vadd.f32 %v2014, %v2146
        %v2148 = vpop.f32.mrf.mxu0
        %v2149 = vpop.f32.mrf.mxu0
        %v2150 = vadd.f32 %v2014, %v2149
        %v2151 = vpop.f32.mrf.mxu0
        %2152 = vmatprep.mubr.bf16.mxu0 %v1963
        %2153 = vmatmul.mubr.bf16.gmra.mxu0 %v1962
        %v2154 = vpop.f32.mrf.mxu0
        %v2155 = vadd.f32 %v2014, %v2154
        %v2156 = vpop.f32.mrf.mxu0
        %v2157 = vpop.f32.mrf.mxu0
        %v2158 = vadd.f32 %v2014, %v2157
        %v2159 = vpop.f32.mrf.mxu0
        %2160 = vmatprep.mubr.bf16.mxu0 %v1965
        %2161 = vmatmul.mubr.bf16.gmra.mxu0 %v1964
        %v2162 = vpop.f32.mrf.mxu0
        %v2163 = vadd.f32 %v2014, %v2162
        %v2164 = vpop.f32.mrf.mxu0
        %v2165 = vpop.f32.mrf.mxu0
        %v2166 = vadd.f32 %v2014, %v2165
        %v2167 = vpop.f32.mrf.mxu0
        %2168 = vmatprep.mubr.bf16.mxu0 %v1967
        %2169 = vmatmul.mubr.bf16.gmra.mxu0 %v1966
        %v2170 = vpop.f32.mrf.mxu0
        %v2171 = vadd.f32 %v2014, %v2170
        %v2172 = vpop.f32.mrf.mxu0
        %v2173 = vpop.f32.mrf.mxu0
        %v2174 = vadd.f32 %v2014, %v2173
        %v2175 = vpop.f32.mrf.mxu0
        %2176 = vmatprep.mubr.bf16.mxu0 %v1969
        %2177 = vmatmul.mubr.bf16.gmra.mxu0 %v1968
        %v2178 = vpop.f32.mrf.mxu0
        %v2179 = vadd.f32 %v2014, %v2178
        %v2180 = vpop.f32.mrf.mxu0
        %v2181 = vpop.f32.mrf.mxu0
        %v2182 = vadd.f32 %v2014, %v2181
        %v2183 = vpop.f32.mrf.mxu0
        %2184 = vmatprep.mubr.bf16.mxu0 %v1971
        %2185 = vmatmul.mubr.bf16.gmra.mxu0 %v1970
        %v2186 = vpop.f32.mrf.mxu0
        %v2187 = vadd.f32 %v2014, %v2186
        %v2188 = vpop.f32.mrf.mxu0
        %v2189 = vpop.f32.mrf.mxu0
        %v2190 = vadd.f32 %v2014, %v2189
        %v2191 = vpop.f32.mrf.mxu0
        %2192 = vmatprep.mubr.bf16.mxu0 %v1973
        %2193 = vmatmul.mubr.bf16.gmra.mxu0 %v1972
        %v2194 = vpop.f32.mrf.mxu0
        %v2195 = vadd.f32 %v2014, %v2194
        %v2196 = vpop.f32.mrf.mxu0
        %v2197 = vpop.f32.mrf.mxu0
        %v2198 = vadd.f32 %v2014, %v2197
        %v2199 = vpop.f32.mrf.mxu0
        %2200 = vmatprep.mubr.bf16.mxu0 %v1975
        %2201 = vmatmul.mubr.bf16.gmra.mxu0 %v1974
        %v2202 = vpop.f32.mrf.mxu0
        %v2203 = vadd.f32 %v2014, %v2202
        %v2204 = vpop.f32.mrf.mxu0
        %v2205 = vpop.f32.mrf.mxu0
        %v2206 = vadd.f32 %v2014, %v2205
        %v2207 = vpop.f32.mrf.mxu0
        %2208 = vdwg.mxu0
        %v2209 = vadd.f32 %v640, %v2147
        %v2210 = vadd.f32 %v641, %v2150
        %v2211 = vadd.f32 %v642, %v2155
        %v2212 = vadd.f32 %v643, %v2158
        %v2213 = vadd.f32 %v644, %v2163
        %v2214 = vadd.f32 %v645, %v2166
        %v2215 = vadd.f32 %v646, %v2171
        %v2216 = vadd.f32 %v647, %v2174
        %v2217 = vadd.f32 %v648, %v2179
        %v2218 = vadd.f32 %v649, %v2182
        %v2219 = vadd.f32 %v650, %v2187
        %v2220 = vadd.f32 %v651, %v2190
        %v2221 = vadd.f32 %v652, %v2195
        %v2222 = vadd.f32 %v653, %v2198
        %v2223 = vadd.f32 %v654, %v2203
        %v2224 = vadd.f32 %v655, %v2206
        %s2225 = sld [smem:[#allocation4 + %s47]]
        %p2226 = scmp.ne.s32.totalorder %s2225, 0
        // Predicated region
        $region81: #{tpu_custom_call.1} parent=51 // pred_check
          %p2227 = pneg %p2226
        $region82: #{tpu_custom_call.1} parent=51 // pred_check_branch
          %2229 = sbr.rel (%p2227) target = $region84
        $region83: #{tpu_custom_call.1} parent=51 // pred_region
          %v2230 = vld [vmem:[%s503] sm:$0xff]
          %v2231 = vld [vmem:[%s503 + $0x8] sm:$0xff]
          %v2232 = vld [vmem:[%s503 + $0x10] sm:$0xff]
          %v2233 = vld [vmem:[%s503 + $0x18] sm:$0xff]
          %v2234 = vld [vmem:[%s503 + $0x20] sm:$0xff]
          %v2235 = vld [vmem:[%s503 + $0x28] sm:$0xff]
          %v2236 = vld [vmem:[%s503 + $0x30] sm:$0xff]
          %v2237 = vld [vmem:[%s503 + $0x38] sm:$0xff]
          %v2238 = vld [vmem:[%s503 + $0x40] sm:$0xff]
          %v2239 = vld [vmem:[%s503 + $0x48] sm:$0xff]
          %v2240 = vld [vmem:[%s503 + $0x50] sm:$0xff]
          %v2241 = vld [vmem:[%s503 + $0x58] sm:$0xff]
          %v2242 = vld [vmem:[%s503 + $0x60] sm:$0xff]
          %v2243 = vld [vmem:[%s503 + $0x68] sm:$0xff]
          %v2244 = vld [vmem:[%s503 + $0x70] sm:$0xff]
          %v2245 = vld [vmem:[%s503 + $0x78] sm:$0xff]
          %v2246 = vadd.f32 %v2209, %v2230
          %v2247 = vadd.f32 %v2210, %v2231
          %v2248 = vadd.f32 %v2211, %v2232
          %v2249 = vadd.f32 %v2212, %v2233
          %v2250 = vadd.f32 %v2213, %v2234
          %v2251 = vadd.f32 %v2214, %v2235
          %v2252 = vadd.f32 %v2215, %v2236
          %v2253 = vadd.f32 %v2216, %v2237
          %v2254 = vadd.f32 %v2217, %v2238
          %v2255 = vadd.f32 %v2218, %v2239
          %v2256 = vadd.f32 %v2219, %v2240
          %v2257 = vadd.f32 %v2220, %v2241
          %v2258 = vadd.f32 %v2221, %v2242
          %v2259 = vadd.f32 %v2222, %v2243
          %v2260 = vadd.f32 %v2223, %v2244
          %v2261 = vadd.f32 %v2224, %v2245
          %2262 = vst [vmem:[#allocation2] sm:$0xff] %v2246
          %2263 = vst [vmem:[#allocation2 + $0x8] sm:$0xff] %v2247
          %2264 = vst [vmem:[#allocation2 + $0x10] sm:$0xff] %v2248
          %2265 = vst [vmem:[#allocation2 + $0x18] sm:$0xff] %v2249
          %2266 = vst [vmem:[#allocation2 + $0x20] sm:$0xff] %v2250
          %2267 = vst [vmem:[#allocation2 + $0x28] sm:$0xff] %v2251
          %2268 = vst [vmem:[#allocation2 + $0x30] sm:$0xff] %v2252
          %2269 = vst [vmem:[#allocation2 + $0x38] sm:$0xff] %v2253
          %2270 = vst [vmem:[#allocation2 + $0x40] sm:$0xff] %v2254
          %2271 = vst [vmem:[#allocation2 + $0x48] sm:$0xff] %v2255
          %2272 = vst [vmem:[#allocation2 + $0x50] sm:$0xff] %v2256
          %2273 = vst [vmem:[#allocation2 + $0x58] sm:$0xff] %v2257
          %2274 = vst [vmem:[#allocation2 + $0x60] sm:$0xff] %v2258
          %2275 = vst [vmem:[#allocation2 + $0x68] sm:$0xff] %v2259
          %2276 = vst [vmem:[#allocation2 + $0x70] sm:$0xff] %v2260
          %2277 = vst [vmem:[#allocation2 + $0x78] sm:$0xff] %v2261
        $region84: #{tpu_custom_call.1} parent=51 // pred_fallthru
          _
        %p2278 = scmp.eq.s32.totalorder %s2225, 0
        // Predicated region
        $region85: #{tpu_custom_call.1} parent=51 // pred_check
          %p2279 = pneg %p2278
        $region86: #{tpu_custom_call.1} parent=51 // pred_check_branch
          %2281 = sbr.rel (%p2279) target = $region88
        $region87: #{tpu_custom_call.1} parent=51 // pred_region
          %2282 = vst [vmem:[#allocation2] sm:$0xff] %v2209
          %2283 = vst [vmem:[#allocation2 + $0x8] sm:$0xff] %v2210
          %2284 = vst [vmem:[#allocation2 + $0x10] sm:$0xff] %v2211
          %2285 = vst [vmem:[#allocation2 + $0x18] sm:$0xff] %v2212
          %2286 = vst [vmem:[#allocation2 + $0x20] sm:$0xff] %v2213
          %2287 = vst [vmem:[#allocation2 + $0x28] sm:$0xff] %v2214
          %2288 = vst [vmem:[#allocation2 + $0x30] sm:$0xff] %v2215
          %2289 = vst [vmem:[#allocation2 + $0x38] sm:$0xff] %v2216
          %2290 = vst [vmem:[#allocation2 + $0x40] sm:$0xff] %v2217
          %2291 = vst [vmem:[#allocation2 + $0x48] sm:$0xff] %v2218
          %2292 = vst [vmem:[#allocation2 + $0x50] sm:$0xff] %v2219
          %2293 = vst [vmem:[#allocation2 + $0x58] sm:$0xff] %v2220
          %2294 = vst [vmem:[#allocation2 + $0x60] sm:$0xff] %v2221
          %2295 = vst [vmem:[#allocation2 + $0x68] sm:$0xff] %v2222
          %2296 = vst [vmem:[#allocation2 + $0x70] sm:$0xff] %v2223
          %2297 = vst [vmem:[#allocation2 + $0x78] sm:$0xff] %v2224
        $region88: #{tpu_custom_call.1} parent=51 // pred_fallthru
          _
        %p2298 = scmp.eq.s32.totalorder %s47, 3
        // Predicated region
        $region89: #{tpu_custom_call.1} parent=51 // pred_check
          %p2299 = pneg %p2298
        $region90: #{tpu_custom_call.1} parent=51 // pred_check_branch
          %2301 = sbr.rel (%p2299) target = $region92
        $region91: #{tpu_custom_call.1} parent=51 // pred_region
          %v2302 = vld [vmem:[#allocation2] sm:$0xff]
          %v2303 = vld [vmem:[#allocation2 + $0x8] sm:$0xff]
          %v2304 = vld [vmem:[#allocation2 + $0x10] sm:$0xff]
          %v2305 = vld [vmem:[#allocation2 + $0x18] sm:$0xff]
          %v2306 = vld [vmem:[#allocation2 + $0x20] sm:$0xff]
          %v2307 = vld [vmem:[#allocation2 + $0x28] sm:$0xff]
          %v2308 = vld [vmem:[#allocation2 + $0x30] sm:$0xff]
          %v2309 = vld [vmem:[#allocation2 + $0x38] sm:$0xff]
          %v2310 = vld [vmem:[#allocation2 + $0x40] sm:$0xff]
          %v2311 = vld [vmem:[#allocation2 + $0x48] sm:$0xff]
          %v2312 = vld [vmem:[#allocation2 + $0x50] sm:$0xff]
          %v2313 = vld [vmem:[#allocation2 + $0x58] sm:$0xff]
          %v2314 = vld [vmem:[#allocation2 + $0x60] sm:$0xff]
          %v2315 = vld [vmem:[#allocation2 + $0x68] sm:$0xff]
          %v2316 = vld [vmem:[#allocation2 + $0x70] sm:$0xff]
          %v2317 = vld [vmem:[#allocation2 + $0x78] sm:$0xff]
          %2318 = vst [vmem:[%s596] sm:$0xff] %v2302
          %2319 = vst [vmem:[%s596 + $0x10] sm:$0xff] %v2303
          %2320 = vst [vmem:[%s596 + $0x20] sm:$0xff] %v2304
          %2321 = vst [vmem:[%s596 + $0x30] sm:$0xff] %v2305
          %2322 = vst [vmem:[%s596 + $0x40] sm:$0xff] %v2306
          %2323 = vst [vmem:[%s596 + $0x50] sm:$0xff] %v2307
          %2324 = vst [vmem:[%s596 + $0x60] sm:$0xff] %v2308
          %2325 = vst [vmem:[%s596 + $0x70] sm:$0xff] %v2309
          %2326 = vst [vmem:[%s596 + $0x80] sm:$0xff] %v2310
          %2327 = vst [vmem:[%s596 + $0x90] sm:$0xff] %v2311
          %2328 = vst [vmem:[%s596 + $0xa0] sm:$0xff] %v2312
          %2329 = vst [vmem:[%s596 + $0xb0] sm:$0xff] %v2313
          %2330 = vst [vmem:[%s596 + $0xc0] sm:$0xff] %v2314
          %2331 = vst [vmem:[%s596 + $0xd0] sm:$0xff] %v2315
          %2332 = vst [vmem:[%s596 + $0xe0] sm:$0xff] %v2316
          %2333 = vst [vmem:[%s596 + $0xf0] sm:$0xff] %v2317
          %v2334 = vld [vmem:[%s503] sm:$0xff]
          %v2335 = vld [vmem:[%s503 + $0x8] sm:$0xff]
          %v2336 = vld [vmem:[%s503 + $0x10] sm:$0xff]
          %v2337 = vld [vmem:[%s503 + $0x18] sm:$0xff]
          %v2338 = vld [vmem:[%s503 + $0x20] sm:$0xff]
          %v2339 = vld [vmem:[%s503 + $0x28] sm:$0xff]
          %v2340 = vld [vmem:[%s503 + $0x30] sm:$0xff]
          %v2341 = vld [vmem:[%s503 + $0x38] sm:$0xff]
          %v2342 = vld [vmem:[%s503 + $0x40] sm:$0xff]
          %v2343 = vld [vmem:[%s503 + $0x48] sm:$0xff]
          %v2344 = vld [vmem:[%s503 + $0x50] sm:$0xff]
          %v2345 = vld [vmem:[%s503 + $0x58] sm:$0xff]
          %v2346 = vld [vmem:[%s503 + $0x60] sm:$0xff]
          %v2347 = vld [vmem:[%s503 + $0x68] sm:$0xff]
          %v2348 = vld [vmem:[%s503 + $0x70] sm:$0xff]
          %v2349 = vld [vmem:[%s503 + $0x78] sm:$0xff]
          %2350 = vst [vmem:[%s596 + $0x8] sm:$0xff] %v2334
          %2351 = vst [vmem:[%s596 + $0x18] sm:$0xff] %v2335
          %2352 = vst [vmem:[%s596 + $0x28] sm:$0xff] %v2336
          %2353 = vst [vmem:[%s596 + $0x38] sm:$0xff] %v2337
          %2354 = vst [vmem:[%s596 + $0x48] sm:$0xff] %v2338
          %2355 = vst [vmem:[%s596 + $0x58] sm:$0xff] %v2339
          %2356 = vst [vmem:[%s596 + $0x68] sm:$0xff] %v2340
          %2357 = vst [vmem:[%s596 + $0x78] sm:$0xff] %v2341
          %2358 = vst [vmem:[%s596 + $0x88] sm:$0xff] %v2342
          %2359 = vst [vmem:[%s596 + $0x98] sm:$0xff] %v2343
          %2360 = vst [vmem:[%s596 + $0xa8] sm:$0xff] %v2344
          %2361 = vst [vmem:[%s596 + $0xb8] sm:$0xff] %v2345
          %2362 = vst [vmem:[%s596 + $0xc8] sm:$0xff] %v2346
          %2363 = vst [vmem:[%s596 + $0xd8] sm:$0xff] %v2347
          %2364 = vst [vmem:[%s596 + $0xe8] sm:$0xff] %v2348
          %2365 = vst [vmem:[%s596 + $0xf8] sm:$0xff] %v2349
        $region92: #{tpu_custom_call.1} parent=51 // pred_fallthru
          _
        %s2366 = sand.u32 %s264, 1
        %s2367 = scalar_lea.sflag [#allocation8], %s2366
        %s2368 = sand.u32 %s264, 1
        %s2369 = smul.addr %s2368, 256
        %s2370 = scalar_lea.vmem [#allocation17], %s2369
        // Predicated region
        $region93: #{tpu_custom_call.1} parent=51 // pred_check
          %p2371 = pneg %p274
        $region94: #{tpu_custom_call.1} parent=51 // pred_check_branch
          %2373 = sbr.rel (%p2371) target = $region96
        $region95: #{tpu_custom_call.1} parent=51 // pred_region
          %s2374 = smul.u32 2, %s46
          %s2376 = ssub.s32 4096, 4096
          %2377 = vsyncadd %s2367, %s2376
          %s2378 = smul.addr %s2374, 16
          %s2379 = smul.addr %s2378, 128
          %s2380 = scalar_lea.hbm %s10, %s2379
          %s2381 = sshll.u32 %s2370, 4
          %s2382 = int_to_ptr.vmem [resolvable:$true] %s2381
          %2387 = dma.vmem_to_hbm [thread:$0]  %s2382, 4096, %s2380, %s2367, 256, 256, 16
        $region96: #{tpu_custom_call.1} parent=51 // pred_fallthru
          _
      $region52: #{tpu_custom_call.1} parent=5 // pred_fallthru
        _
      %p2388 = scmp.le.s32.totalorder 2, %s37
      // Predicated region
      $region97: #{tpu_custom_call.1} parent=5 // pred_check
        %p2389 = pneg %p2388
      $region98: #{tpu_custom_call.1} parent=5 // pred_check_branch
        %2391 = sbr.rel (%p2389) target = $region100
      $region99: #{tpu_custom_call.1} parent=5 // pred_region
        %s2392 = ssub.s32 %s37, 2
        // Predicated region
        $region101: #{tpu_custom_call.1} parent=99 // pred_check
          %p2393 = pneg %p280
        $region102: #{tpu_custom_call.1} parent=99 // pred_check_branch
          %2395 = sbr.rel (%p2393) target = $region104
        $region103: #{tpu_custom_call.1} parent=99 // pred_region
          %s2396 = sand.u32 %s265, 1
          %s2397 = scalar_lea.sflag [#allocation8], %s2396
          %s2398 = sand.u32 %s265, 1
          %s2399 = smul.addr %s2398, 256
          %s2400 = scalar_lea.vmem [#allocation17], %s2399
          %2401 = dma.done %s2397, 4096
        $region104: #{tpu_custom_call.1} parent=99 // pred_fallthru
          _
      $region100: #{tpu_custom_call.1} parent=5 // pred_fallthru
        _
    $region6: #{tpu_custom_call.1} parent=1 // loop_footer
      %s41 = sadd.s32 1, %s37
    $region7: #{tpu_custom_call.1} parent=1 // loop_footer_branch
      %36 = sbr.rel target = $region3
    $region8: #{tpu_custom_call.1} parent=1 // loop_exit
      _
    %2402 = vsyncpa [#allocation7], 1
    %s2403 = scalar_lea.sflag [#allocation7], 1
    %2404 = vsyncpa %s2403, 1
    %2405 = vsyncpa [#allocation10], 1
    %s2406 = scalar_lea.sflag [#allocation10], 1
    %2407 = vsyncpa %s2406, 1
    %2408 = vsyncpa [#allocation13], 1
    %s2409 = scalar_lea.sflag [#allocation13], 1
    %2410 = vsyncpa %s2409, 1
    %2411 = vsyncpa [#allocation16], 1
    %s2412 = scalar_lea.sflag [#allocation16], 1
    %2413 = vsyncpa %s2412, 1
    %2414 = vsyncpa [#allocation8], 1
    %s2415 = scalar_lea.sflag [#allocation8], 1
    %2416 = vsyncpa %s2415, 1

</llo_original>
